<compile_context>
chip_gen: v6e
topology: v6e:2x2x1
jax: 0.10.0
libtpu: 0.0.40
codegen_flags: <defaults>
</compile_context>

<pallas_src>
import functools

import jax
import jax.numpy as jnp
from jax.experimental import pallas as pl
from jax.experimental.pallas import tpu as pltpu


def _lstm_fc_softmax_kernel(
    x_ref,      # (T*B, E)  time-major, batch-padded, flattened input
    wih_ref,    # (E, 4H)   input->gates weights (transposed)
    whh_ref,    # (H, 4H)   hidden->gates weights (transposed)
    b_ref,      # (1, 4H)   combined bias (b_ih + b_hh)
    w1_ref,     # (H, 48)
    b1_ref,     # (1, 48)
    w2_ref,     # (48, 24)
    b2_ref,     # (1, 24)
    w3_ref,     # (24, 2)
    b3_ref,     # (1, 2)
    out_ref,    # (B, 2)
    *,
    T: int,
    B: int,     # padded batch (multiple of 8)
    H: int,
):
    # --- One-shot input projection for all timesteps (hoisted out of loop) ---
    # (T*B, E) @ (E, 4H) + b  ->  (T*B, 4H)
    gp = (
        jnp.dot(x_ref[...], wih_ref[...], preferred_element_type=jnp.float32)
        + b_ref[...]
    )

    whh = whh_ref[...]                                   # (H, 4H), kept in vregs

    h = jnp.zeros((B, H), jnp.float32)
    c = jnp.zeros((B, H), jnp.float32)

    # --- Fully unrolled recurrence: only one MXU matmul per step -------------
    for t in range(T):
        gates = gp[t * B:(t + 1) * B, :] + jnp.dot(
            h, whh, preferred_element_type=jnp.float32)  # (B, 4H)
        # Two full-width EUP passes instead of four 32-lane partial ones.
        s = jax.nn.sigmoid(gates)                        # i, f, o live here
        th = jnp.tanh(gates)                             # g lives here
        i = s[:, 0 * H:1 * H]
        f = s[:, 1 * H:2 * H]
        g = th[:, 2 * H:3 * H]
        o = s[:, 3 * H:4 * H]
        c = f * c + i * g
        h = o * jnp.tanh(c)

    # --- fc1 -> fc2 -> fc3 (no inter-layer nonlinearity, as in reference) ----
    z1 = jnp.dot(h, w1_ref[...], preferred_element_type=jnp.float32) + b1_ref[...]
    z2 = jnp.dot(z1, w2_ref[...], preferred_element_type=jnp.float32) + b2_ref[...]
    z3 = jnp.dot(z2, w3_ref[...], preferred_element_type=jnp.float32) + b3_ref[...]

    # --- 2-class softmax == sigmoid of the logit difference ------------------
    p0 = jax.nn.sigmoid(z3[:, 0:1] - z3[:, 1:2])         # (B, 1)
    out_ref[...] = jnp.concatenate([p0, 1.0 - p0], axis=1)


def net_forward(x, params):
    """x: (B, T, E) float32, batch_first like the PyTorch module."""
    B, T, E = x.shape
    H = params["w_hh"].shape[1]                          # w_hh is (4H, H)

    # Pad batch to a multiple of 8 sublanes (free; padded rows are discarded).
    B_pad = ((B + 7) // 8) * 8
    x_p = jnp.pad(x, ((0, B_pad - B), (0, 0), (0, 0)))
    # Time-major, flattened for the one-shot input projection: (T*B_pad, E).
    x_tm = jnp.transpose(x_p, (1, 0, 2)).reshape(T * B_pad, E)

    ins = (
        x_tm,
        params["w_ih"].T,                                 # (E, 4H)
        params["w_hh"].T,                                 # (H, 4H)
        (params["b_ih"] + params["b_hh"]).reshape(1, -1), # (1, 4H)
        params["fc1_w"].T, params["fc1_b"].reshape(1, -1),
        params["fc2_w"].T, params["fc2_b"].reshape(1, -1),
        params["fc3_w"].T, params["fc3_b"].reshape(1, -1),
    )

    vmem = pl.BlockSpec(memory_space=pltpu.MemorySpace.VMEM)
    kernel = functools.partial(_lstm_fc_softmax_kernel, T=T, B=B_pad, H=H)
    out = pl.pallas_call(
        kernel,
        out_shape=jax.ShapeDtypeStruct((B_pad, 2), jnp.float32),
        in_specs=[vmem] * len(ins),
        out_specs=vmem,
    )(*ins)
    return out[:B]


def init_params(key, embed_size, hidden_size):
    """Deterministic init mirroring PyTorch's U(-1/sqrt(fan_in)) scheme."""
    ks = jax.random.split(key, 10)
    s = 1.0 / jnp.sqrt(hidden_size)

    def u(k, shape, scale):
        return jax.random.uniform(k, shape, jnp.float32, -scale, scale)

    return {
        "w_ih": u(ks[0], (4 * hidden_size, embed_size), s),
        "w_hh": u(ks[1], (4 * hidden_size, hidden_size), s),
        "b_ih": u(ks[2], (4 * hidden_size,), s),
        "b_hh": u(ks[3], (4 * hidden_size,), s),
        "fc1_w": u(ks[4], (48, hidden_size), 1.0 / jnp.sqrt(hidden_size)),
        "fc1_b": u(ks[5], (48,), 1.0 / jnp.sqrt(hidden_size)),
        "fc2_w": u(ks[6], (24, 48), 1.0 / jnp.sqrt(48.0)),
        "fc2_b": u(ks[7], (24,), 1.0 / jnp.sqrt(48.0)),
        "fc3_w": u(ks[8], (2, 24), 1.0 / jnp.sqrt(24.0)),
        "fc3_b": u(ks[9], (2,), 1.0 / jnp.sqrt(24.0)),
    }


def net_forward_ref(x, params):
    """Pure-JAX reference of the same forward pass."""
    B, T, E = x.shape
    H = params["w_hh"].shape[1]
    h = jnp.zeros((B, H), jnp.float32)
    c = jnp.zeros((B, H), jnp.float32)
    w_ih_t = params["w_ih"].T
    w_hh_t = params["w_hh"].T
    b = params["b_ih"] + params["b_hh"]
    for t in range(T):
        g = x[:, t, :] @ w_ih_t + h @ w_hh_t + b
        i = jax.nn.sigmoid(g[:, 0 * H:1 * H])
        f = jax.nn.sigmoid(g[:, 1 * H:2 * H])
        gg = jnp.tanh(g[:, 2 * H:3 * H])
        o = jax.nn.sigmoid(g[:, 3 * H:4 * H])
        c = f * c + i * gg
        h = o * jnp.tanh(c)
    z = h @ params["fc1_w"].T + params["fc1_b"]
    z = z @ params["fc2_w"].T + params["fc2_b"]
    z = z @ params["fc3_w"].T + params["fc3_b"]
    return jax.nn.softmax(z, axis=1)


if __name__ == "__main__":
    B, T, E, H = 2, 8, 16, 32
    key = jax.random.PRNGKey(0)
    kx, kp = jax.random.split(key)

    x = jax.random.normal(kx, (B, T, E), jnp.float32)
    params = init_params(kp, E, H)

    out = jax.block_until_ready(net_forward(x, params))
    ref = net_forward_ref(x, params)

    assert out.shape == (B, 2), out.shape
    assert jnp.allclose(out, ref, atol=2e-3, rtol=2e-3), (out, ref)
    assert jnp.allclose(jnp.sum(out, axis=1), 1.0, atol=1e-5)

    print("KERNEL_OK")
</pallas_src>

<mosaic_0001>
module attributes {stable_mosaic.version = 11 : i64} {
  func.func @_lstm_fc_softmax_kernel(%arg0: memref<64x16xf32, #tpu.memory_space<vmem>>, %arg1: memref<16x128xf32, #tpu.memory_space<vmem>>, %arg2: memref<32x128xf32, #tpu.memory_space<vmem>>, %arg3: memref<1x128xf32, #tpu.memory_space<vmem>>, %arg4: memref<32x48xf32, #tpu.memory_space<vmem>>, %arg5: memref<1x48xf32, #tpu.memory_space<vmem>>, %arg6: memref<48x24xf32, #tpu.memory_space<vmem>>, %arg7: memref<1x24xf32, #tpu.memory_space<vmem>>, %arg8: memref<24x2xf32, #tpu.memory_space<vmem>>, %arg9: memref<1x2xf32, #tpu.memory_space<vmem>>, %arg10: memref<8x2xf32, #tpu.memory_space<vmem>>) attributes {dimension_semantics = [], scalar_prefetch = 0 : i64, scratch_operands = 0 : i64, tpu.core_type = #tpu.core_type<tc>} {
    %c0 = arith.constant 0 : index
    %c0_0 = arith.constant 0 : index
    %0 = vector.load %arg0[%c0, %c0_0] : memref<64x16xf32, #tpu.memory_space<vmem>>, vector<64x16xf32>
    %c0_1 = arith.constant 0 : index
    %c0_2 = arith.constant 0 : index
    %1 = vector.load %arg1[%c0_1, %c0_2] : memref<16x128xf32, #tpu.memory_space<vmem>>, vector<16x128xf32>
    %cst = arith.constant dense<0.000000e+00> : vector<64x128xf32>
    %2 = tpu.matmul %0, %1, %cst {dimension_numbers = #tpu.dot_dimension_numbers<[1], [0], [0], [1], [0, 0, 1, 1], [], []>} : vector<64x16xf32>, vector<16x128xf32>, vector<64x128xf32> -> vector<64x128xf32>
    %c0_3 = arith.constant 0 : index
    %c0_4 = arith.constant 0 : index
    %3 = vector.load %arg3[%c0_3, %c0_4] : memref<1x128xf32, #tpu.memory_space<vmem>>, vector<1x128xf32>
    %4 = vector.broadcast %3 : vector<1x128xf32> to vector<64x128xf32>
    %5 = arith.addf %2, %4 : vector<64x128xf32>
    %c0_5 = arith.constant 0 : index
    %c0_6 = arith.constant 0 : index
    %6 = vector.load %arg2[%c0_5, %c0_6] : memref<32x128xf32, #tpu.memory_space<vmem>>, vector<32x128xf32>
    %cst_7 = arith.constant 0.000000e+00 : f32
    %7 = vector.broadcast %cst_7 : f32 to vector<8x32xf32>
    %cst_8 = arith.constant 0.000000e+00 : f32
    %8 = vector.broadcast %cst_8 : f32 to vector<8x32xf32>
    %9 = vector.extract_strided_slice %5 {offsets = [0, 0], sizes = [8, 128], strides = [1, 1]} : vector<64x128xf32> to vector<8x128xf32>
    %cst_9 = arith.constant dense<0.000000e+00> : vector<8x128xf32>
    %10 = tpu.matmul %7, %6, %cst_9 {dimension_numbers = #tpu.dot_dimension_numbers<[1], [0], [0], [1], [0, 0, 1, 1], [], []>} : vector<8x32xf32>, vector<32x128xf32>, vector<8x128xf32> -> vector<8x128xf32>
    %11 = arith.addf %9, %10 : vector<8x128xf32>
    %12 = arith.negf %11 : vector<8x128xf32>
    %13 = math.exp %12 : vector<8x128xf32>
    %cst_10 = arith.constant 1.000000e+00 : f32
    %14 = vector.broadcast %cst_10 : f32 to vector<8x128xf32>
    %15 = arith.addf %14, %13 : vector<8x128xf32>
    %16 = arith.divf %14, %15 : vector<8x128xf32>
    %17 = math.tanh %11 : vector<8x128xf32>
    %18 = vector.extract_strided_slice %16 {offsets = [0, 0], sizes = [8, 32], strides = [1, 1]} : vector<8x128xf32> to vector<8x32xf32>
    %19 = vector.extract_strided_slice %16 {offsets = [0, 32], sizes = [8, 32], strides = [1, 1]} : vector<8x128xf32> to vector<8x32xf32>
    %20 = vector.extract_strided_slice %17 {offsets = [0, 64], sizes = [8, 32], strides = [1, 1]} : vector<8x128xf32> to vector<8x32xf32>
    %21 = vector.extract_strided_slice %16 {offsets = [0, 96], sizes = [8, 32], strides = [1, 1]} : vector<8x128xf32> to vector<8x32xf32>
    %22 = arith.mulf %19, %8 : vector<8x32xf32>
    %23 = arith.mulf %18, %20 : vector<8x32xf32>
    %24 = arith.addf %22, %23 : vector<8x32xf32>
    %25 = math.tanh %24 : vector<8x32xf32>
    %26 = arith.mulf %21, %25 : vector<8x32xf32>
    %27 = vector.extract_strided_slice %5 {offsets = [8, 0], sizes = [8, 128], strides = [1, 1]} : vector<64x128xf32> to vector<8x128xf32>
    %cst_11 = arith.constant dense<0.000000e+00> : vector<8x128xf32>
    %28 = tpu.matmul %26, %6, %cst_11 {dimension_numbers = #tpu.dot_dimension_numbers<[1], [0], [0], [1], [0, 0, 1, 1], [], []>} : vector<8x32xf32>, vector<32x128xf32>, vector<8x128xf32> -> vector<8x128xf32>
    %29 = arith.addf %27, %28 : vector<8x128xf32>
    %30 = arith.negf %29 : vector<8x128xf32>
    %31 = math.exp %30 : vector<8x128xf32>
    %cst_12 = arith.constant 1.000000e+00 : f32
    %32 = vector.broadcast %cst_12 : f32 to vector<8x128xf32>
    %33 = arith.addf %32, %31 : vector<8x128xf32>
    %34 = arith.divf %32, %33 : vector<8x128xf32>
    %35 = math.tanh %29 : vector<8x128xf32>
    %36 = vector.extract_strided_slice %34 {offsets = [0, 0], sizes = [8, 32], strides = [1, 1]} : vector<8x128xf32> to vector<8x32xf32>
    %37 = vector.extract_strided_slice %34 {offsets = [0, 32], sizes = [8, 32], strides = [1, 1]} : vector<8x128xf32> to vector<8x32xf32>
    %38 = vector.extract_strided_slice %35 {offsets = [0, 64], sizes = [8, 32], strides = [1, 1]} : vector<8x128xf32> to vector<8x32xf32>
    %39 = vector.extract_strided_slice %34 {offsets = [0, 96], sizes = [8, 32], strides = [1, 1]} : vector<8x128xf32> to vector<8x32xf32>
    %40 = arith.mulf %37, %24 : vector<8x32xf32>
    %41 = arith.mulf %36, %38 : vector<8x32xf32>
    %42 = arith.addf %40, %41 : vector<8x32xf32>
    %43 = math.tanh %42 : vector<8x32xf32>
    %44 = arith.mulf %39, %43 : vector<8x32xf32>
    %45 = vector.extract_strided_slice %5 {offsets = [16, 0], sizes = [8, 128], strides = [1, 1]} : vector<64x128xf32> to vector<8x128xf32>
    %cst_13 = arith.constant dense<0.000000e+00> : vector<8x128xf32>
    %46 = tpu.matmul %44, %6, %cst_13 {dimension_numbers = #tpu.dot_dimension_numbers<[1], [0], [0], [1], [0, 0, 1, 1], [], []>} : vector<8x32xf32>, vector<32x128xf32>, vector<8x128xf32> -> vector<8x128xf32>
    %47 = arith.addf %45, %46 : vector<8x128xf32>
    %48 = arith.negf %47 : vector<8x128xf32>
    %49 = math.exp %48 : vector<8x128xf32>
    %cst_14 = arith.constant 1.000000e+00 : f32
    %50 = vector.broadcast %cst_14 : f32 to vector<8x128xf32>
    %51 = arith.addf %50, %49 : vector<8x128xf32>
    %52 = arith.divf %50, %51 : vector<8x128xf32>
    %53 = math.tanh %47 : vector<8x128xf32>
    %54 = vector.extract_strided_slice %52 {offsets = [0, 0], sizes = [8, 32], strides = [1, 1]} : vector<8x128xf32> to vector<8x32xf32>
    %55 = vector.extract_strided_slice %52 {offsets = [0, 32], sizes = [8, 32], strides = [1, 1]} : vector<8x128xf32> to vector<8x32xf32>
    %56 = vector.extract_strided_slice %53 {offsets = [0, 64], sizes = [8, 32], strides = [1, 1]} : vector<8x128xf32> to vector<8x32xf32>
    %57 = vector.extract_strided_slice %52 {offsets = [0, 96], sizes = [8, 32], strides = [1, 1]} : vector<8x128xf32> to vector<8x32xf32>
    %58 = arith.mulf %55, %42 : vector<8x32xf32>
    %59 = arith.mulf %54, %56 : vector<8x32xf32>
    %60 = arith.addf %58, %59 : vector<8x32xf32>
    %61 = math.tanh %60 : vector<8x32xf32>
    %62 = arith.mulf %57, %61 : vector<8x32xf32>
    %63 = vector.extract_strided_slice %5 {offsets = [24, 0], sizes = [8, 128], strides = [1, 1]} : vector<64x128xf32> to vector<8x128xf32>
    %cst_15 = arith.constant dense<0.000000e+00> : vector<8x128xf32>
    %64 = tpu.matmul %62, %6, %cst_15 {dimension_numbers = #tpu.dot_dimension_numbers<[1], [0], [0], [1], [0, 0, 1, 1], [], []>} : vector<8x32xf32>, vector<32x128xf32>, vector<8x128xf32> -> vector<8x128xf32>
    %65 = arith.addf %63, %64 : vector<8x128xf32>
    %66 = arith.negf %65 : vector<8x128xf32>
    %67 = math.exp %66 : vector<8x128xf32>
    %cst_16 = arith.constant 1.000000e+00 : f32
    %68 = vector.broadcast %cst_16 : f32 to vector<8x128xf32>
    %69 = arith.addf %68, %67 : vector<8x128xf32>
    %70 = arith.divf %68, %69 : vector<8x128xf32>
    %71 = math.tanh %65 : vector<8x128xf32>
    %72 = vector.extract_strided_slice %70 {offsets = [0, 0], sizes = [8, 32], strides = [1, 1]} : vector<8x128xf32> to vector<8x32xf32>
    %73 = vector.extract_strided_slice %70 {offsets = [0, 32], sizes = [8, 32], strides = [1, 1]} : vector<8x128xf32> to vector<8x32xf32>
    %74 = vector.extract_strided_slice %71 {offsets = [0, 64], sizes = [8, 32], strides = [1, 1]} : vector<8x128xf32> to vector<8x32xf32>
    %75 = vector.extract_strided_slice %70 {offsets = [0, 96], sizes = [8, 32], strides = [1, 1]} : vector<8x128xf32> to vector<8x32xf32>
    %76 = arith.mulf %73, %60 : vector<8x32xf32>
    %77 = arith.mulf %72, %74 : vector<8x32xf32>
    %78 = arith.addf %76, %77 : vector<8x32xf32>
    %79 = math.tanh %78 : vector<8x32xf32>
    %80 = arith.mulf %75, %79 : vector<8x32xf32>
    %81 = vector.extract_strided_slice %5 {offsets = [32, 0], sizes = [8, 128], strides = [1, 1]} : vector<64x128xf32> to vector<8x128xf32>
    %cst_17 = arith.constant dense<0.000000e+00> : vector<8x128xf32>
    %82 = tpu.matmul %80, %6, %cst_17 {dimension_numbers = #tpu.dot_dimension_numbers<[1], [0], [0], [1], [0, 0, 1, 1], [], []>} : vector<8x32xf32>, vector<32x128xf32>, vector<8x128xf32> -> vector<8x128xf32>
    %83 = arith.addf %81, %82 : vector<8x128xf32>
    %84 = arith.negf %83 : vector<8x128xf32>
    %85 = math.exp %84 : vector<8x128xf32>
    %cst_18 = arith.constant 1.000000e+00 : f32
    %86 = vector.broadcast %cst_18 : f32 to vector<8x128xf32>
    %87 = arith.addf %86, %85 : vector<8x128xf32>
    %88 = arith.divf %86, %87 : vector<8x128xf32>
    %89 = math.tanh %83 : vector<8x128xf32>
    %90 = vector.extract_strided_slice %88 {offsets = [0, 0], sizes = [8, 32], strides = [1, 1]} : vector<8x128xf32> to vector<8x32xf32>
    %91 = vector.extract_strided_slice %88 {offsets = [0, 32], sizes = [8, 32], strides = [1, 1]} : vector<8x128xf32> to vector<8x32xf32>
    %92 = vector.extract_strided_slice %89 {offsets = [0, 64], sizes = [8, 32], strides = [1, 1]} : vector<8x128xf32> to vector<8x32xf32>
    %93 = vector.extract_strided_slice %88 {offsets = [0, 96], sizes = [8, 32], strides = [1, 1]} : vector<8x128xf32> to vector<8x32xf32>
    %94 = arith.mulf %91, %78 : vector<8x32xf32>
    %95 = arith.mulf %90, %92 : vector<8x32xf32>
    %96 = arith.addf %94, %95 : vector<8x32xf32>
    %97 = math.tanh %96 : vector<8x32xf32>
    %98 = arith.mulf %93, %97 : vector<8x32xf32>
    %99 = vector.extract_strided_slice %5 {offsets = [40, 0], sizes = [8, 128], strides = [1, 1]} : vector<64x128xf32> to vector<8x128xf32>
    %cst_19 = arith.constant dense<0.000000e+00> : vector<8x128xf32>
    %100 = tpu.matmul %98, %6, %cst_19 {dimension_numbers = #tpu.dot_dimension_numbers<[1], [0], [0], [1], [0, 0, 1, 1], [], []>} : vector<8x32xf32>, vector<32x128xf32>, vector<8x128xf32> -> vector<8x128xf32>
    %101 = arith.addf %99, %100 : vector<8x128xf32>
    %102 = arith.negf %101 : vector<8x128xf32>
    %103 = math.exp %102 : vector<8x128xf32>
    %cst_20 = arith.constant 1.000000e+00 : f32
    %104 = vector.broadcast %cst_20 : f32 to vector<8x128xf32>
    %105 = arith.addf %104, %103 : vector<8x128xf32>
    %106 = arith.divf %104, %105 : vector<8x128xf32>
    %107 = math.tanh %101 : vector<8x128xf32>
    %108 = vector.extract_strided_slice %106 {offsets = [0, 0], sizes = [8, 32], strides = [1, 1]} : vector<8x128xf32> to vector<8x32xf32>
    %109 = vector.extract_strided_slice %106 {offsets = [0, 32], sizes = [8, 32], strides = [1, 1]} : vector<8x128xf32> to vector<8x32xf32>
    %110 = vector.extract_strided_slice %107 {offsets = [0, 64], sizes = [8, 32], strides = [1, 1]} : vector<8x128xf32> to vector<8x32xf32>
    %111 = vector.extract_strided_slice %106 {offsets = [0, 96], sizes = [8, 32], strides = [1, 1]} : vector<8x128xf32> to vector<8x32xf32>
    %112 = arith.mulf %109, %96 : vector<8x32xf32>
    %113 = arith.mulf %108, %110 : vector<8x32xf32>
    %114 = arith.addf %112, %113 : vector<8x32xf32>
    %115 = math.tanh %114 : vector<8x32xf32>
    %116 = arith.mulf %111, %115 : vector<8x32xf32>
    %117 = vector.extract_strided_slice %5 {offsets = [48, 0], sizes = [8, 128], strides = [1, 1]} : vector<64x128xf32> to vector<8x128xf32>
    %cst_21 = arith.constant dense<0.000000e+00> : vector<8x128xf32>
    %118 = tpu.matmul %116, %6, %cst_21 {dimension_numbers = #tpu.dot_dimension_numbers<[1], [0], [0], [1], [0, 0, 1, 1], [], []>} : vector<8x32xf32>, vector<32x128xf32>, vector<8x128xf32> -> vector<8x128xf32>
    %119 = arith.addf %117, %118 : vector<8x128xf32>
    %120 = arith.negf %119 : vector<8x128xf32>
    %121 = math.exp %120 : vector<8x128xf32>
    %cst_22 = arith.constant 1.000000e+00 : f32
    %122 = vector.broadcast %cst_22 : f32 to vector<8x128xf32>
    %123 = arith.addf %122, %121 : vector<8x128xf32>
    %124 = arith.divf %122, %123 : vector<8x128xf32>
    %125 = math.tanh %119 : vector<8x128xf32>
    %126 = vector.extract_strided_slice %124 {offsets = [0, 0], sizes = [8, 32], strides = [1, 1]} : vector<8x128xf32> to vector<8x32xf32>
    %127 = vector.extract_strided_slice %124 {offsets = [0, 32], sizes = [8, 32], strides = [1, 1]} : vector<8x128xf32> to vector<8x32xf32>
    %128 = vector.extract_strided_slice %125 {offsets = [0, 64], sizes = [8, 32], strides = [1, 1]} : vector<8x128xf32> to vector<8x32xf32>
    %129 = vector.extract_strided_slice %124 {offsets = [0, 96], sizes = [8, 32], strides = [1, 1]} : vector<8x128xf32> to vector<8x32xf32>
    %130 = arith.mulf %127, %114 : vector<8x32xf32>
    %131 = arith.mulf %126, %128 : vector<8x32xf32>
    %132 = arith.addf %130, %131 : vector<8x32xf32>
    %133 = math.tanh %132 : vector<8x32xf32>
    %134 = arith.mulf %129, %133 : vector<8x32xf32>
    %135 = vector.extract_strided_slice %5 {offsets = [56, 0], sizes = [8, 128], strides = [1, 1]} : vector<64x128xf32> to vector<8x128xf32>
    %cst_23 = arith.constant dense<0.000000e+00> : vector<8x128xf32>
    %136 = tpu.matmul %134, %6, %cst_23 {dimension_numbers = #tpu.dot_dimension_numbers<[1], [0], [0], [1], [0, 0, 1, 1], [], []>} : vector<8x32xf32>, vector<32x128xf32>, vector<8x128xf32> -> vector<8x128xf32>
    %137 = arith.addf %135, %136 : vector<8x128xf32>
    %138 = arith.negf %137 : vector<8x128xf32>
    %139 = math.exp %138 : vector<8x128xf32>
    %cst_24 = arith.constant 1.000000e+00 : f32
    %140 = vector.broadcast %cst_24 : f32 to vector<8x128xf32>
    %141 = arith.addf %140, %139 : vector<8x128xf32>
    %142 = arith.divf %140, %141 : vector<8x128xf32>
    %143 = math.tanh %137 : vector<8x128xf32>
    %144 = vector.extract_strided_slice %142 {offsets = [0, 0], sizes = [8, 32], strides = [1, 1]} : vector<8x128xf32> to vector<8x32xf32>
    %145 = vector.extract_strided_slice %142 {offsets = [0, 32], sizes = [8, 32], strides = [1, 1]} : vector<8x128xf32> to vector<8x32xf32>
    %146 = vector.extract_strided_slice %143 {offsets = [0, 64], sizes = [8, 32], strides = [1, 1]} : vector<8x128xf32> to vector<8x32xf32>
    %147 = vector.extract_strided_slice %142 {offsets = [0, 96], sizes = [8, 32], strides = [1, 1]} : vector<8x128xf32> to vector<8x32xf32>
    %148 = arith.mulf %145, %132 : vector<8x32xf32>
    %149 = arith.mulf %144, %146 : vector<8x32xf32>
    %150 = arith.addf %148, %149 : vector<8x32xf32>
    %151 = math.tanh %150 : vector<8x32xf32>
    %152 = arith.mulf %147, %151 : vector<8x32xf32>
    %c0_25 = arith.constant 0 : index
    %c0_26 = arith.constant 0 : index
    %153 = vector.load %arg4[%c0_25, %c0_26] : memref<32x48xf32, #tpu.memory_space<vmem>>, vector<32x48xf32>
    %cst_27 = arith.constant dense<0.000000e+00> : vector<8x48xf32>
    %154 = tpu.matmul %152, %153, %cst_27 {dimension_numbers = #tpu.dot_dimension_numbers<[1], [0], [0], [1], [0, 0, 1, 1], [], []>} : vector<8x32xf32>, vector<32x48xf32>, vector<8x48xf32> -> vector<8x48xf32>
    %c0_28 = arith.constant 0 : index
    %c0_29 = arith.constant 0 : index
    %155 = vector.load %arg5[%c0_28, %c0_29] : memref<1x48xf32, #tpu.memory_space<vmem>>, vector<1x48xf32>
    %156 = vector.broadcast %155 : vector<1x48xf32> to vector<8x48xf32>
    %157 = arith.addf %154, %156 : vector<8x48xf32>
    %c0_30 = arith.constant 0 : index
    %c0_31 = arith.constant 0 : index
    %158 = vector.load %arg6[%c0_30, %c0_31] : memref<48x24xf32, #tpu.memory_space<vmem>>, vector<48x24xf32>
    %cst_32 = arith.constant dense<0.000000e+00> : vector<8x24xf32>
    %159 = tpu.matmul %157, %158, %cst_32 {dimension_numbers = #tpu.dot_dimension_numbers<[1], [0], [0], [1], [0, 0, 1, 1], [], []>} : vector<8x48xf32>, vector<48x24xf32>, vector<8x24xf32> -> vector<8x24xf32>
    %c0_33 = arith.constant 0 : index
    %c0_34 = arith.constant 0 : index
    %160 = vector.load %arg7[%c0_33, %c0_34] : memref<1x24xf32, #tpu.memory_space<vmem>>, vector<1x24xf32>
    %161 = vector.broadcast %160 : vector<1x24xf32> to vector<8x24xf32>
    %162 = arith.addf %159, %161 : vector<8x24xf32>
    %c0_35 = arith.constant 0 : index
    %c0_36 = arith.constant 0 : index
    %163 = vector.load %arg8[%c0_35, %c0_36] : memref<24x2xf32, #tpu.memory_space<vmem>>, vector<24x2xf32>
    %cst_37 = arith.constant dense<0.000000e+00> : vector<8x2xf32>
    %164 = tpu.matmul %162, %163, %cst_37 {dimension_numbers = #tpu.dot_dimension_numbers<[1], [0], [0], [1], [0, 0, 1, 1], [], []>} : vector<8x24xf32>, vector<24x2xf32>, vector<8x2xf32> -> vector<8x2xf32>
    %c0_38 = arith.constant 0 : index
    %c0_39 = arith.constant 0 : index
    %165 = vector.load %arg9[%c0_38, %c0_39] : memref<1x2xf32, #tpu.memory_space<vmem>>, vector<1x2xf32>
    %166 = vector.broadcast %165 : vector<1x2xf32> to vector<8x2xf32>
    %167 = arith.addf %164, %166 : vector<8x2xf32>
    %168 = vector.extract_strided_slice %167 {offsets = [0, 0], sizes = [8, 1], strides = [1, 1]} : vector<8x2xf32> to vector<8x1xf32>
    %169 = vector.extract_strided_slice %167 {offsets = [0, 1], sizes = [8, 1], strides = [1, 1]} : vector<8x2xf32> to vector<8x1xf32>
    %170 = arith.subf %168, %169 : vector<8x1xf32>
    %171 = arith.negf %170 : vector<8x1xf32>
    %172 = math.exp %171 : vector<8x1xf32>
    %cst_40 = arith.constant 1.000000e+00 : f32
    %173 = vector.broadcast %cst_40 : f32 to vector<8x1xf32>
    %174 = arith.addf %173, %172 : vector<8x1xf32>
    %175 = arith.divf %173, %174 : vector<8x1xf32>
    %cst_41 = arith.constant 1.000000e+00 : f32
    %176 = vector.broadcast %cst_41 : f32 to vector<8x1xf32>
    %177 = arith.subf %176, %175 : vector<8x1xf32>
    %178 = tpu.concatenate %175, %177 in 1 : vector<8x1xf32>, vector<8x1xf32> -> vector<8x2xf32>
    %c0_42 = arith.constant 0 : index
    %c0_43 = arith.constant 0 : index
    %179 = vector.load %arg10[%c0_42, %c0_43] : memref<8x2xf32, #tpu.memory_space<vmem>>, vector<8x2xf32>
    tpu.vector_store %arg10[%c0_42, %c0_43], %178 {strides = array<i32>} : memref<8x2xf32, #tpu.memory_space<vmem>>, vector<8x2xf32>,
    return
  }
}

</mosaic_0001>

<llo_original>
// kernel: tpu_custom_call.1
$region0: #{tpu_custom_call.1}
  #allocation0 [shape = 'u32[]', space=smem, size = 0x4, offset = 0x4, fixed_abs, tag = 'smem constant byte address 0x4 - core index']
  #allocation1 [shape = 'u32[144,128]{1,0:T(1,128)}', space=vmem, size = 0x12000, scoped, tag = 'internal scratch']
  %s0 = inlined_call_operand.vmem [shape: f32[64,16], index: 0, kind: input, shape index: {}]
  %s1 = inlined_call_operand.vmem [shape: f32[16,128], index: 1, kind: input, shape index: {}]
  %s2 = inlined_call_operand.vmem [shape: f32[32,128], index: 2, kind: input, shape index: {}]
  %s3 = inlined_call_operand.vmem [shape: f32[1,128], index: 3, kind: input, shape index: {}]
  %s4 = inlined_call_operand.vmem [shape: f32[32,48], index: 4, kind: input, shape index: {}]
  %s5 = inlined_call_operand.vmem [shape: f32[1,48], index: 5, kind: input, shape index: {}]
  %s6 = inlined_call_operand.vmem [shape: f32[48,24], index: 6, kind: input, shape index: {}]
  %s7 = inlined_call_operand.vmem [shape: f32[1,24], index: 7, kind: input, shape index: {}]
  %s8 = inlined_call_operand.vmem [shape: f32[24,2], index: 8, kind: input, shape index: {}]
  %s9 = inlined_call_operand.vmem [shape: f32[1,2], index: 9, kind: input, shape index: {}]
  %s10 = inlined_call_operand.vmem [shape: f32[8,2], index: 10, kind: output, shape index: {}]
  %s11 = sld [smem:[#allocation0]]
  $region50: #{tpu_custom_call.1} parent=0
    _
  %s13 = ssub.s32 1, %s11
  %s14 = scalar_select 0, %s13, %s11
  // Predicated region
  $region2: #{tpu_custom_call.1} parent=0 // pred_check
    _
  $region3: #{tpu_custom_call.1} parent=0 // pred_check_branch
    %16 = sbr.rel (0) target = $region5
  $region4: #{tpu_custom_call.1} parent=0 // pred_region
    _
  $region5: #{tpu_custom_call.1} parent=0 // pred_fallthru
    _
  // Predicated region
  $region6: #{tpu_custom_call.1} parent=0 // pred_check
    _
  $region7: #{tpu_custom_call.1} parent=0 // pred_check_branch
    %18 = sbr.rel (0) target = $region9
  $region8: #{tpu_custom_call.1} parent=0 // pred_region
    _
  $region9: #{tpu_custom_call.1} parent=0 // pred_fallthru
    _
  // Predicated region
  $region10: #{tpu_custom_call.1} parent=0 // pred_check
    _
  $region11: #{tpu_custom_call.1} parent=0 // pred_check_branch
    %20 = sbr.rel (0) target = $region13
  $region12: #{tpu_custom_call.1} parent=0 // pred_region
    _
  $region13: #{tpu_custom_call.1} parent=0 // pred_fallthru
    _
  // Predicated region
  $region14: #{tpu_custom_call.1} parent=0 // pred_check
    _
  $region15: #{tpu_custom_call.1} parent=0 // pred_check_branch
    %22 = sbr.rel (0) target = $region17
  $region16: #{tpu_custom_call.1} parent=0 // pred_region
    _
  $region17: #{tpu_custom_call.1} parent=0 // pred_fallthru
    _
  // Predicated region
  $region18: #{tpu_custom_call.1} parent=0 // pred_check
    _
  $region19: #{tpu_custom_call.1} parent=0 // pred_check_branch
    %24 = sbr.rel (0) target = $region21
  $region20: #{tpu_custom_call.1} parent=0 // pred_region
    _
  $region21: #{tpu_custom_call.1} parent=0 // pred_fallthru
    _
  // Predicated region
  $region22: #{tpu_custom_call.1} parent=0 // pred_check
    _
  $region23: #{tpu_custom_call.1} parent=0 // pred_check_branch
    %26 = sbr.rel (0) target = $region25
  $region24: #{tpu_custom_call.1} parent=0 // pred_region
    _
  $region25: #{tpu_custom_call.1} parent=0 // pred_fallthru
    _
  // Predicated region
  $region26: #{tpu_custom_call.1} parent=0 // pred_check
    _
  $region27: #{tpu_custom_call.1} parent=0 // pred_check_branch
    %28 = sbr.rel (0) target = $region29
  $region28: #{tpu_custom_call.1} parent=0 // pred_region
    _
  $region29: #{tpu_custom_call.1} parent=0 // pred_fallthru
    _
  // Predicated region
  $region30: #{tpu_custom_call.1} parent=0 // pred_check
    _
  $region31: #{tpu_custom_call.1} parent=0 // pred_check_branch
    %30 = sbr.rel (0) target = $region33
  $region32: #{tpu_custom_call.1} parent=0 // pred_region
    _
  $region33: #{tpu_custom_call.1} parent=0 // pred_fallthru
    _
  // Predicated region
  $region34: #{tpu_custom_call.1} parent=0 // pred_check
    _
  $region35: #{tpu_custom_call.1} parent=0 // pred_check_branch
    %32 = sbr.rel (0) target = $region37
  $region36: #{tpu_custom_call.1} parent=0 // pred_region
    _
  $region37: #{tpu_custom_call.1} parent=0 // pred_fallthru
    _
  // Predicated region
  $region38: #{tpu_custom_call.1} parent=0 // pred_check
    _
  $region39: #{tpu_custom_call.1} parent=0 // pred_check_branch
    %34 = sbr.rel (0) target = $region41
  $region40: #{tpu_custom_call.1} parent=0 // pred_region
    _
  $region41: #{tpu_custom_call.1} parent=0 // pred_fallthru
    _
  %v35 = vld [vmem:[%s0] sm:$0xff]
  %v36 = vld [vmem:[%s0 + $0x8] sm:$0xff]
  %v37 = vld [vmem:[%s0 + $0x10] sm:$0xff]
  %v38 = vld [vmem:[%s0 + $0x18] sm:$0xff]
  %v39 = vld [vmem:[%s0 + $0x20] sm:$0xff]
  %v40 = vld [vmem:[%s0 + $0x28] sm:$0xff]
  %v41 = vld [vmem:[%s0 + $0x30] sm:$0xff]
  %v42 = vld [vmem:[%s0 + $0x38] sm:$0xff]
  %v43 = vld [vmem:[%s1] sm:$0xff]
  %v44 = vld [vmem:[%s1 + $0x8] sm:$0xff]
  %v45 = vld [vmem:[%s3] sm:$0x1]
  %v47 = vlaneseq
  %v48 = vshrl.u32 %v47, 7
  %v49 = vsub.s32 0, %v48
  %v50 = vrot.slane %v45, %v49
  %vm52 = vcmask 130048
  %v54 = vsel %vm52, %v35, 0
  %v57 = vsel %vm52, %v36, 0
  %v60 = vsel %vm52, %v37, 0
  %v63 = vsel %vm52, %v38, 0
  %v66 = vsel %vm52, %v39, 0
  %v69 = vsel %vm52, %v40, 0
  %v72 = vsel %vm52, %v41, 0
  %v75 = vsel %vm52, %v42, 0
  %77 = vmatprep.subr.mxu0 0.0
  %78 = vmatpush1.msra.mxu0 0.0
  %79 = vmatprep.subr.mxu0 0.0
  %80 = vmatpush1.msra.mxu0 0.0
  %81 = vmatprep.subr.mxu0 0.0
  %82 = vmatpush1.msra.mxu0 0.0
  %83 = vmatprep.subr.mxu0 0.0
  %84 = vmatpush1.msra.mxu0 0.0
  %85 = vmatprep.subr.mxu0 0.0
  %86 = vmatpush1.msra.mxu0 0.0
  %87 = vmatprep.subr.mxu0 0.0
  %88 = vmatpush1.msra.mxu0 0.0
  %89 = vmatprep.subr.mxu0 0.0
  %90 = vmatpush1.msra.mxu0 0.0
  %91 = vmatprep.subr.mxu0 0.0
  %92 = vmatpush1.msra.mxu0 0.0
  %93 = vmatprep.subr.mxu0 0.0
  %94 = vmatpush1.msra.mxu0 0.0
  %95 = vmatprep.subr.mxu0 0.0
  %96 = vmatpush1.msra.mxu0 0.0
  %97 = vmatprep.subr.mxu0 0.0
  %98 = vmatpush1.msra.mxu0 0.0
  %99 = vmatprep.subr.mxu0 0.0
  %100 = vmatpush1.msra.mxu0 0.0
  %101 = vmatprep.subr.mxu0 0.0
  %102 = vmatpush1.msra.mxu0 0.0
  %103 = vmatprep.subr.mxu0 0.0
  %104 = vmatpush1.msra.mxu0 0.0
  %105 = vmatprep.subr.mxu0 0.0
  %106 = vmatpush1.msra.mxu0 %v44
  %107 = vmatprep.subr.mxu0 0.0
  %108 = vmatpush1.msra.mxu0 %v43
  %109 = vmatprep.subr.mxu0 0.0
  %110 = vmatpush2.msra.mxu0 0.0
  %111 = vmatprep.subr.mxu0 0.0
  %112 = vmatpush2.msra.mxu0 0.0
  %113 = vmatprep.subr.mxu0 0.0
  %114 = vmatpush2.msra.mxu0 0.0
  %115 = vmatprep.subr.mxu0 0.0
  %116 = vmatpush2.msra.mxu0 0.0
  %117 = vmatprep.subr.mxu0 0.0
  %118 = vmatpush2.msra.mxu0 0.0
  %119 = vmatprep.subr.mxu0 0.0
  %120 = vmatpush2.msra.mxu0 0.0
  %121 = vmatprep.subr.mxu0 0.0
  %122 = vmatpush2.msra.mxu0 0.0
  %123 = vmatprep.subr.mxu0 0.0
  %124 = vmatpush2.msra.mxu0 0.0
  %125 = vmatprep.subr.mxu0 0.0
  %126 = vmatpush2.msra.mxu0 0.0
  %127 = vmatprep.subr.mxu0 0.0
  %128 = vmatpush2.msra.mxu0 0.0
  %129 = vmatprep.subr.mxu0 0.0
  %130 = vmatpush2.msra.mxu0 0.0
  %131 = vmatprep.subr.mxu0 0.0
  %132 = vmatpush2.msra.mxu0 0.0
  %133 = vmatprep.subr.mxu0 0.0
  %134 = vmatpush2.msra.mxu0 0.0
  %135 = vmatprep.subr.mxu0 0.0
  %136 = vmatpush2.msra.mxu0 0.0
  %137 = vmatprep.subr.mxu0 0.0
  %138 = vmatpush2.msra.mxu0 0.0
  %139 = vmatprep.subr.mxu0 0.0
  %140 = vmatpush2.msra.mxu0 0.0
  %141 = vmatprep.mubr.f32.mxu0 0.0
  %142 = vmatmul.mubr.f32.gmra.mxu0 %v54
  %v143 = vpop.f32.mrf.mxu0
  %v144 = vadd.f32 %v50, %v143
  %v145 = vpop.f32.mrf.mxu0
  %146 = vmatprep.mubr.f32.mxu0 0.0
  %147 = vmatmul.mubr.f32.gmra.mxu0 %v57
  %v148 = vpop.f32.mrf.mxu0
  %v149 = vadd.f32 %v50, %v148
  %v150 = vpop.f32.mrf.mxu0
  %151 = vmatprep.mubr.f32.mxu0 0.0
  %152 = vmatmul.mubr.f32.gmra.mxu0 %v60
  %v153 = vpop.f32.mrf.mxu0
  %v154 = vadd.f32 %v50, %v153
  %v155 = vpop.f32.mrf.mxu0
  %156 = vmatprep.mubr.f32.mxu0 0.0
  %157 = vmatmul.mubr.f32.gmra.mxu0 %v63
  %v158 = vpop.f32.mrf.mxu0
  %v159 = vadd.f32 %v50, %v158
  %v160 = vpop.f32.mrf.mxu0
  %161 = vmatprep.mubr.f32.mxu0 0.0
  %162 = vmatmul.mubr.f32.gmra.mxu0 %v66
  %v163 = vpop.f32.mrf.mxu0
  %v164 = vadd.f32 %v50, %v163
  %v165 = vpop.f32.mrf.mxu0
  %166 = vmatprep.mubr.f32.mxu0 0.0
  %167 = vmatmul.mubr.f32.gmra.mxu0 %v69
  %v168 = vpop.f32.mrf.mxu0
  %v169 = vadd.f32 %v50, %v168
  %v170 = vpop.f32.mrf.mxu0
  %171 = vmatprep.mubr.f32.mxu0 0.0
  %172 = vmatmul.mubr.f32.gmra.mxu0 %v72
  %v173 = vpop.f32.mrf.mxu0
  %v174 = vadd.f32 %v50, %v173
  %v175 = vpop.f32.mrf.mxu0
  %176 = vmatprep.mubr.f32.mxu0 0.0
  %177 = vmatmul.mubr.f32.gmra.mxu0 %v75
  %v178 = vpop.f32.mrf.mxu0
  %v179 = vadd.f32 %v50, %v178
  %v180 = vpop.f32.mrf.mxu0
  %181 = vdwg.mxu0
  %v182 = vld [vmem:[%s2] sm:$0xff]
  %v183 = vld [vmem:[%s2 + $0x8] sm:$0xff]
  %v184 = vld [vmem:[%s2 + $0x10] sm:$0xff]
  %v185 = vld [vmem:[%s2 + $0x18] sm:$0xff]
  %vm186 = vcmask 261120
  %v188 = vsel %vm186, 0.0, 0
  %190 = vmatprep.subr.mxu0 0.0
  %191 = vmatpush1.msra.mxu0 0.0
  %192 = vmatprep.subr.mxu0 0.0
  %193 = vmatpush1.msra.mxu0 0.0
  %194 = vmatprep.subr.mxu0 0.0
  %195 = vmatpush1.msra.mxu0 0.0
  %196 = vmatprep.subr.mxu0 0.0
  %197 = vmatpush1.msra.mxu0 0.0
  %198 = vmatprep.subr.mxu0 0.0
  %199 = vmatpush1.msra.mxu0 0.0
  %200 = vmatprep.subr.mxu0 0.0
  %201 = vmatpush1.msra.mxu0 0.0
  %202 = vmatprep.subr.mxu0 0.0
  %203 = vmatpush1.msra.mxu0 0.0
  %204 = vmatprep.subr.mxu0 0.0
  %205 = vmatpush1.msra.mxu0 0.0
  %206 = vmatprep.subr.mxu0 0.0
  %207 = vmatpush1.msra.mxu0 0.0
  %208 = vmatprep.subr.mxu0 0.0
  %209 = vmatpush1.msra.mxu0 0.0
  %210 = vmatprep.subr.mxu0 0.0
  %211 = vmatpush1.msra.mxu0 0.0
  %212 = vmatprep.subr.mxu0 0.0
  %213 = vmatpush1.msra.mxu0 0.0
  %214 = vmatprep.subr.mxu0 0.0
  %215 = vmatpush1.msra.mxu0 %v185
  %216 = vmatprep.subr.mxu0 0.0
  %217 = vmatpush1.msra.mxu0 %v184
  %218 = vmatprep.subr.mxu0 0.0
  %219 = vmatpush1.msra.mxu0 %v183
  %220 = vmatprep.subr.mxu0 0.0
  %221 = vmatpush1.msra.mxu0 %v182
  %222 = vmatprep.subr.mxu0 0.0
  %223 = vmatpush2.msra.mxu0 0.0
  %224 = vmatprep.subr.mxu0 0.0
  %225 = vmatpush2.msra.mxu0 0.0
  %226 = vmatprep.subr.mxu0 0.0
  %227 = vmatpush2.msra.mxu0 0.0
  %228 = vmatprep.subr.mxu0 0.0
  %229 = vmatpush2.msra.mxu0 0.0
  %230 = vmatprep.subr.mxu0 0.0
  %231 = vmatpush2.msra.mxu0 0.0
  %232 = vmatprep.subr.mxu0 0.0
  %233 = vmatpush2.msra.mxu0 0.0
  %234 = vmatprep.subr.mxu0 0.0
  %235 = vmatpush2.msra.mxu0 0.0
  %236 = vmatprep.subr.mxu0 0.0
  %237 = vmatpush2.msra.mxu0 0.0
  %238 = vmatprep.subr.mxu0 0.0
  %239 = vmatpush2.msra.mxu0 0.0
  %240 = vmatprep.subr.mxu0 0.0
  %241 = vmatpush2.msra.mxu0 0.0
  %242 = vmatprep.subr.mxu0 0.0
  %243 = vmatpush2.msra.mxu0 0.0
  %244 = vmatprep.subr.mxu0 0.0
  %245 = vmatpush2.msra.mxu0 0.0
  %246 = vmatprep.subr.mxu0 0.0
  %247 = vmatpush2.msra.mxu0 0.0
  %248 = vmatprep.subr.mxu0 0.0
  %249 = vmatpush2.msra.mxu0 0.0
  %250 = vmatprep.subr.mxu0 0.0
  %251 = vmatpush2.msra.mxu0 0.0
  %252 = vmatprep.subr.mxu0 0.0
  %253 = vmatpush2.msra.mxu0 0.0
  %254 = vmatprep.mubr.f32.mxu0 0.0
  %255 = vmatmul.mubr.f32.gmra.mxu0 %v188
  %v256 = vpop.f32.mrf.mxu0
  %v257 = vadd.f32 0.0, %v256
  %v258 = vpop.f32.mrf.mxu0
  %259 = vdwg.mxu0
  %v260 = vadd.f32 %v144, %v257
  %v261 = vxor.u32 %v260, 2147483648
  %v262 = vmul.f32 %v261, 1.442695
  %v263 = vpow.pop %v262
  %v264 = vadd.f32 %v263, 1.0
  %v265 = vrcp.pop %v264
  %v266 = vmul.f32 1.0, %v265
  %v267 = vtanh.pop %v260
  %v268 = vmul.f32 %v266, 0.0
  %270 = vrot.lane.b32.xlu0 %v267, 64
  %v271 = vpop.permute.xlu0 %270
  %v273 = vmul.f32 %v266, %v271
  %275 = vrot.lane.b32.xlu0 %v273, 32
  %v276 = vpop.permute.xlu0 %275
  %v278 = vadd.f32 %v268, %v276
  %v279 = vtanh.pop %v278
  %281 = vrot.lane.b32.xlu0 %v279, 64
  %v282 = vpop.permute.xlu0 %281
  %v284 = vmul.f32 %v266, %v282
  %286 = vrot.lane.b32.xlu0 %v284, 32
  %v287 = vpop.permute.xlu0 %286
  %v288 = vsel %vm186, %v287, 0
  %290 = vmatprep.subr.mxu0 0.0
  %291 = vmatpush1.msra.mxu0 0.0
  %292 = vmatprep.subr.mxu0 0.0
  %293 = vmatpush1.msra.mxu0 0.0
  %294 = vmatprep.subr.mxu0 0.0
  %295 = vmatpush1.msra.mxu0 0.0
  %296 = vmatprep.subr.mxu0 0.0
  %297 = vmatpush1.msra.mxu0 0.0
  %298 = vmatprep.subr.mxu0 0.0
  %299 = vmatpush1.msra.mxu0 0.0
  %300 = vmatprep.subr.mxu0 0.0
  %301 = vmatpush1.msra.mxu0 0.0
  %302 = vmatprep.subr.mxu0 0.0
  %303 = vmatpush1.msra.mxu0 0.0
  %304 = vmatprep.subr.mxu0 0.0
  %305 = vmatpush1.msra.mxu0 0.0
  %306 = vmatprep.subr.mxu0 0.0
  %307 = vmatpush1.msra.mxu0 0.0
  %308 = vmatprep.subr.mxu0 0.0
  %309 = vmatpush1.msra.mxu0 0.0
  %310 = vmatprep.subr.mxu0 0.0
  %311 = vmatpush1.msra.mxu0 0.0
  %312 = vmatprep.subr.mxu0 0.0
  %313 = vmatpush1.msra.mxu0 0.0
  %314 = vmatprep.subr.mxu0 0.0
  %315 = vmatpush1.msra.mxu0 %v185
  %316 = vmatprep.subr.mxu0 0.0
  %317 = vmatpush1.msra.mxu0 %v184
  %318 = vmatprep.subr.mxu0 0.0
  %319 = vmatpush1.msra.mxu0 %v183
  %320 = vmatprep.subr.mxu0 0.0
  %321 = vmatpush1.msra.mxu0 %v182
  %322 = vmatprep.subr.mxu0 0.0
  %323 = vmatpush2.msra.mxu0 0.0
  %324 = vmatprep.subr.mxu0 0.0
  %325 = vmatpush2.msra.mxu0 0.0
  %326 = vmatprep.subr.mxu0 0.0
  %327 = vmatpush2.msra.mxu0 0.0
  %328 = vmatprep.subr.mxu0 0.0
  %329 = vmatpush2.msra.mxu0 0.0
  %330 = vmatprep.subr.mxu0 0.0
  %331 = vmatpush2.msra.mxu0 0.0
  %332 = vmatprep.subr.mxu0 0.0
  %333 = vmatpush2.msra.mxu0 0.0
  %334 = vmatprep.subr.mxu0 0.0
  %335 = vmatpush2.msra.mxu0 0.0
  %336 = vmatprep.subr.mxu0 0.0
  %337 = vmatpush2.msra.mxu0 0.0
  %338 = vmatprep.subr.mxu0 0.0
  %339 = vmatpush2.msra.mxu0 0.0
  %340 = vmatprep.subr.mxu0 0.0
  %341 = vmatpush2.msra.mxu0 0.0
  %342 = vmatprep.subr.mxu0 0.0
  %343 = vmatpush2.msra.mxu0 0.0
  %344 = vmatprep.subr.mxu0 0.0
  %345 = vmatpush2.msra.mxu0 0.0
  %346 = vmatprep.subr.mxu0 0.0
  %347 = vmatpush2.msra.mxu0 0.0
  %348 = vmatprep.subr.mxu0 0.0
  %349 = vmatpush2.msra.mxu0 0.0
  %350 = vmatprep.subr.mxu0 0.0
  %351 = vmatpush2.msra.mxu0 0.0
  %352 = vmatprep.subr.mxu0 0.0
  %353 = vmatpush2.msra.mxu0 0.0
  %354 = vmatprep.mubr.f32.mxu0 0.0
  %355 = vmatmul.mubr.f32.gmra.mxu0 %v288
  %v356 = vpop.f32.mrf.mxu0
  %v357 = vadd.f32 0.0, %v356
  %v358 = vpop.f32.mrf.mxu0
  %359 = vdwg.mxu0
  %v360 = vadd.f32 %v149, %v357
  %v361 = vxor.u32 %v360, 2147483648
  %v362 = vmul.f32 %v361, 1.442695
  %v363 = vpow.pop %v362
  %v364 = vadd.f32 %v363, 1.0
  %v365 = vrcp.pop %v364
  %v366 = vmul.f32 1.0, %v365
  %v367 = vtanh.pop %v360
  %v368 = vmul.f32 %v366, %v278
  %370 = vrot.lane.b32.xlu0 %v367, 64
  %v371 = vpop.permute.xlu0 %370
  %v373 = vmul.f32 %v366, %v371
  %375 = vrot.lane.b32.xlu0 %v373, 32
  %v376 = vpop.permute.xlu0 %375
  %v378 = vadd.f32 %v368, %v376
  %v379 = vtanh.pop %v378
  %381 = vrot.lane.b32.xlu0 %v379, 64
  %v382 = vpop.permute.xlu0 %381
  %v384 = vmul.f32 %v366, %v382
  %386 = vrot.lane.b32.xlu0 %v384, 32
  %v387 = vpop.permute.xlu0 %386
  %v388 = vsel %vm186, %v387, 0
  %390 = vmatprep.subr.mxu0 0.0
  %391 = vmatpush1.msra.mxu0 0.0
  %392 = vmatprep.subr.mxu0 0.0
  %393 = vmatpush1.msra.mxu0 0.0
  %394 = vmatprep.subr.mxu0 0.0
  %395 = vmatpush1.msra.mxu0 0.0
  %396 = vmatprep.subr.mxu0 0.0
  %397 = vmatpush1.msra.mxu0 0.0
  %398 = vmatprep.subr.mxu0 0.0
  %399 = vmatpush1.msra.mxu0 0.0
  %400 = vmatprep.subr.mxu0 0.0
  %401 = vmatpush1.msra.mxu0 0.0
  %402 = vmatprep.subr.mxu0 0.0
  %403 = vmatpush1.msra.mxu0 0.0
  %404 = vmatprep.subr.mxu0 0.0
  %405 = vmatpush1.msra.mxu0 0.0
  %406 = vmatprep.subr.mxu0 0.0
  %407 = vmatpush1.msra.mxu0 0.0
  %408 = vmatprep.subr.mxu0 0.0
  %409 = vmatpush1.msra.mxu0 0.0
  %410 = vmatprep.subr.mxu0 0.0
  %411 = vmatpush1.msra.mxu0 0.0
  %412 = vmatprep.subr.mxu0 0.0
  %413 = vmatpush1.msra.mxu0 0.0
  %414 = vmatprep.subr.mxu0 0.0
  %415 = vmatpush1.msra.mxu0 %v185
  %416 = vmatprep.subr.mxu0 0.0
  %417 = vmatpush1.msra.mxu0 %v184
  %418 = vmatprep.subr.mxu0 0.0
  %419 = vmatpush1.msra.mxu0 %v183
  %420 = vmatprep.subr.mxu0 0.0
  %421 = vmatpush1.msra.mxu0 %v182
  %422 = vmatprep.subr.mxu0 0.0
  %423 = vmatpush2.msra.mxu0 0.0
  %424 = vmatprep.subr.mxu0 0.0
  %425 = vmatpush2.msra.mxu0 0.0
  %426 = vmatprep.subr.mxu0 0.0
  %427 = vmatpush2.msra.mxu0 0.0
  %428 = vmatprep.subr.mxu0 0.0
  %429 = vmatpush2.msra.mxu0 0.0
  %430 = vmatprep.subr.mxu0 0.0
  %431 = vmatpush2.msra.mxu0 0.0
  %432 = vmatprep.subr.mxu0 0.0
  %433 = vmatpush2.msra.mxu0 0.0
  %434 = vmatprep.subr.mxu0 0.0
  %435 = vmatpush2.msra.mxu0 0.0
  %436 = vmatprep.subr.mxu0 0.0
  %437 = vmatpush2.msra.mxu0 0.0
  %438 = vmatprep.subr.mxu0 0.0
  %439 = vmatpush2.msra.mxu0 0.0
  %440 = vmatprep.subr.mxu0 0.0
  %441 = vmatpush2.msra.mxu0 0.0
  %442 = vmatprep.subr.mxu0 0.0
  %443 = vmatpush2.msra.mxu0 0.0
  %444 = vmatprep.subr.mxu0 0.0
  %445 = vmatpush2.msra.mxu0 0.0
  %446 = vmatprep.subr.mxu0 0.0
  %447 = vmatpush2.msra.mxu0 0.0
  %448 = vmatprep.subr.mxu0 0.0
  %449 = vmatpush2.msra.mxu0 0.0
  %450 = vmatprep.subr.mxu0 0.0
  %451 = vmatpush2.msra.mxu0 0.0
  %452 = vmatprep.subr.mxu0 0.0
  %453 = vmatpush2.msra.mxu0 0.0
  %454 = vmatprep.mubr.f32.mxu0 0.0
  %455 = vmatmul.mubr.f32.gmra.mxu0 %v388
  %v456 = vpop.f32.mrf.mxu0
  %v457 = vadd.f32 0.0, %v456
  %v458 = vpop.f32.mrf.mxu0
  %459 = vdwg.mxu0
  %v460 = vadd.f32 %v154, %v457
  %v461 = vxor.u32 %v460, 2147483648
  %v462 = vmul.f32 %v461, 1.442695
  %v463 = vpow.pop %v462
  %v464 = vadd.f32 %v463, 1.0
  %v465 = vrcp.pop %v464
  %v466 = vmul.f32 1.0, %v465
  %v467 = vtanh.pop %v460
  %v468 = vmul.f32 %v466, %v378
  %470 = vrot.lane.b32.xlu0 %v467, 64
  %v471 = vpop.permute.xlu0 %470
  %v473 = vmul.f32 %v466, %v471
  %475 = vrot.lane.b32.xlu0 %v473, 32
  %v476 = vpop.permute.xlu0 %475
  %v478 = vadd.f32 %v468, %v476
  %v479 = vtanh.pop %v478
  %481 = vrot.lane.b32.xlu0 %v479, 64
  %v482 = vpop.permute.xlu0 %481
  %v484 = vmul.f32 %v466, %v482
  %486 = vrot.lane.b32.xlu0 %v484, 32
  %v487 = vpop.permute.xlu0 %486
  %v488 = vsel %vm186, %v487, 0
  %490 = vmatprep.subr.mxu0 0.0
  %491 = vmatpush1.msra.mxu0 0.0
  %492 = vmatprep.subr.mxu0 0.0
  %493 = vmatpush1.msra.mxu0 0.0
  %494 = vmatprep.subr.mxu0 0.0
  %495 = vmatpush1.msra.mxu0 0.0
  %496 = vmatprep.subr.mxu0 0.0
  %497 = vmatpush1.msra.mxu0 0.0
  %498 = vmatprep.subr.mxu0 0.0
  %499 = vmatpush1.msra.mxu0 0.0
  %500 = vmatprep.subr.mxu0 0.0
  %501 = vmatpush1.msra.mxu0 0.0
  %502 = vmatprep.subr.mxu0 0.0
  %503 = vmatpush1.msra.mxu0 0.0
  %504 = vmatprep.subr.mxu0 0.0
  %505 = vmatpush1.msra.mxu0 0.0
  %506 = vmatprep.subr.mxu0 0.0
  %507 = vmatpush1.msra.mxu0 0.0
  %508 = vmatprep.subr.mxu0 0.0
  %509 = vmatpush1.msra.mxu0 0.0
  %510 = vmatprep.subr.mxu0 0.0
  %511 = vmatpush1.msra.mxu0 0.0
  %512 = vmatprep.subr.mxu0 0.0
  %513 = vmatpush1.msra.mxu0 0.0
  %514 = vmatprep.subr.mxu0 0.0
  %515 = vmatpush1.msra.mxu0 %v185
  %516 = vmatprep.subr.mxu0 0.0
  %517 = vmatpush1.msra.mxu0 %v184
  %518 = vmatprep.subr.mxu0 0.0
  %519 = vmatpush1.msra.mxu0 %v183
  %520 = vmatprep.subr.mxu0 0.0
  %521 = vmatpush1.msra.mxu0 %v182
  %522 = vmatprep.subr.mxu0 0.0
  %523 = vmatpush2.msra.mxu0 0.0
  %524 = vmatprep.subr.mxu0 0.0
  %525 = vmatpush2.msra.mxu0 0.0
  %526 = vmatprep.subr.mxu0 0.0
  %527 = vmatpush2.msra.mxu0 0.0
  %528 = vmatprep.subr.mxu0 0.0
  %529 = vmatpush2.msra.mxu0 0.0
  %530 = vmatprep.subr.mxu0 0.0
  %531 = vmatpush2.msra.mxu0 0.0
  %532 = vmatprep.subr.mxu0 0.0
  %533 = vmatpush2.msra.mxu0 0.0
  %534 = vmatprep.subr.mxu0 0.0
  %535 = vmatpush2.msra.mxu0 0.0
  %536 = vmatprep.subr.mxu0 0.0
  %537 = vmatpush2.msra.mxu0 0.0
  %538 = vmatprep.subr.mxu0 0.0
  %539 = vmatpush2.msra.mxu0 0.0
  %540 = vmatprep.subr.mxu0 0.0
  %541 = vmatpush2.msra.mxu0 0.0
  %542 = vmatprep.subr.mxu0 0.0
  %543 = vmatpush2.msra.mxu0 0.0
  %544 = vmatprep.subr.mxu0 0.0
  %545 = vmatpush2.msra.mxu0 0.0
  %546 = vmatprep.subr.mxu0 0.0
  %547 = vmatpush2.msra.mxu0 0.0
  %548 = vmatprep.subr.mxu0 0.0
  %549 = vmatpush2.msra.mxu0 0.0
  %550 = vmatprep.subr.mxu0 0.0
  %551 = vmatpush2.msra.mxu0 0.0
  %552 = vmatprep.subr.mxu0 0.0
  %553 = vmatpush2.msra.mxu0 0.0
  %554 = vmatprep.mubr.f32.mxu0 0.0
  %555 = vmatmul.mubr.f32.gmra.mxu0 %v488
  %v556 = vpop.f32.mrf.mxu0
  %v557 = vadd.f32 0.0, %v556
  %v558 = vpop.f32.mrf.mxu0
  %559 = vdwg.mxu0
  %v560 = vadd.f32 %v159, %v557
  %v561 = vxor.u32 %v560, 2147483648
  %v562 = vmul.f32 %v561, 1.442695
  %v563 = vpow.pop %v562
  %v564 = vadd.f32 %v563, 1.0
  %v565 = vrcp.pop %v564
  %v566 = vmul.f32 1.0, %v565
  %v567 = vtanh.pop %v560
  %v568 = vmul.f32 %v566, %v478
  %570 = vrot.lane.b32.xlu0 %v567, 64
  %v571 = vpop.permute.xlu0 %570
  %v573 = vmul.f32 %v566, %v571
  %575 = vrot.lane.b32.xlu0 %v573, 32
  %v576 = vpop.permute.xlu0 %575
  %v578 = vadd.f32 %v568, %v576
  %v579 = vtanh.pop %v578
  %581 = vrot.lane.b32.xlu0 %v579, 64
  %v582 = vpop.permute.xlu0 %581
  %v584 = vmul.f32 %v566, %v582
  %586 = vrot.lane.b32.xlu0 %v584, 32
  %v587 = vpop.permute.xlu0 %586
  %v588 = vsel %vm186, %v587, 0
  %590 = vmatprep.subr.mxu0 0.0
  %591 = vmatpush1.msra.mxu0 0.0
  %592 = vmatprep.subr.mxu0 0.0
  %593 = vmatpush1.msra.mxu0 0.0
  %594 = vmatprep.subr.mxu0 0.0
  %595 = vmatpush1.msra.mxu0 0.0
  %596 = vmatprep.subr.mxu0 0.0
  %597 = vmatpush1.msra.mxu0 0.0
  %598 = vmatprep.subr.mxu0 0.0
  %599 = vmatpush1.msra.mxu0 0.0
  %600 = vmatprep.subr.mxu0 0.0
  %601 = vmatpush1.msra.mxu0 0.0
  %602 = vmatprep.subr.mxu0 0.0
  %603 = vmatpush1.msra.mxu0 0.0
  %604 = vmatprep.subr.mxu0 0.0
  %605 = vmatpush1.msra.mxu0 0.0
  %606 = vmatprep.subr.mxu0 0.0
  %607 = vmatpush1.msra.mxu0 0.0
  %608 = vmatprep.subr.mxu0 0.0
  %609 = vmatpush1.msra.mxu0 0.0
  %610 = vmatprep.subr.mxu0 0.0
  %611 = vmatpush1.msra.mxu0 0.0
  %612 = vmatprep.subr.mxu0 0.0
  %613 = vmatpush1.msra.mxu0 0.0
  %614 = vmatprep.subr.mxu0 0.0
  %615 = vmatpush1.msra.mxu0 %v185
  %616 = vmatprep.subr.mxu0 0.0
  %617 = vmatpush1.msra.mxu0 %v184
  %618 = vmatprep.subr.mxu0 0.0
  %619 = vmatpush1.msra.mxu0 %v183
  %620 = vmatprep.subr.mxu0 0.0
  %621 = vmatpush1.msra.mxu0 %v182
  %622 = vmatprep.subr.mxu0 0.0
  %623 = vmatpush2.msra.mxu0 0.0
  %624 = vmatprep.subr.mxu0 0.0
  %625 = vmatpush2.msra.mxu0 0.0
  %626 = vmatprep.subr.mxu0 0.0
  %627 = vmatpush2.msra.mxu0 0.0
  %628 = vmatprep.subr.mxu0 0.0
  %629 = vmatpush2.msra.mxu0 0.0
  %630 = vmatprep.subr.mxu0 0.0
  %631 = vmatpush2.msra.mxu0 0.0
  %632 = vmatprep.subr.mxu0 0.0
  %633 = vmatpush2.msra.mxu0 0.0
  %634 = vmatprep.subr.mxu0 0.0
  %635 = vmatpush2.msra.mxu0 0.0
  %636 = vmatprep.subr.mxu0 0.0
  %637 = vmatpush2.msra.mxu0 0.0
  %638 = vmatprep.subr.mxu0 0.0
  %639 = vmatpush2.msra.mxu0 0.0
  %640 = vmatprep.subr.mxu0 0.0
  %641 = vmatpush2.msra.mxu0 0.0
  %642 = vmatprep.subr.mxu0 0.0
  %643 = vmatpush2.msra.mxu0 0.0
  %644 = vmatprep.subr.mxu0 0.0
  %645 = vmatpush2.msra.mxu0 0.0
  %646 = vmatprep.subr.mxu0 0.0
  %647 = vmatpush2.msra.mxu0 0.0
  %648 = vmatprep.subr.mxu0 0.0
  %649 = vmatpush2.msra.mxu0 0.0
  %650 = vmatprep.subr.mxu0 0.0
  %651 = vmatpush2.msra.mxu0 0.0
  %652 = vmatprep.subr.mxu0 0.0
  %653 = vmatpush2.msra.mxu0 0.0
  %654 = vmatprep.mubr.f32.mxu0 0.0
  %655 = vmatmul.mubr.f32.gmra.mxu0 %v588
  %v656 = vpop.f32.mrf.mxu0
  %v657 = vadd.f32 0.0, %v656
  %v658 = vpop.f32.mrf.mxu0
  %659 = vdwg.mxu0
  %v660 = vadd.f32 %v164, %v657
  %v661 = vxor.u32 %v660, 2147483648
  %v662 = vmul.f32 %v661, 1.442695
  %v663 = vpow.pop %v662
  %v664 = vadd.f32 %v663, 1.0
  %v665 = vrcp.pop %v664
  %v666 = vmul.f32 1.0, %v665
  %v667 = vtanh.pop %v660
  %v668 = vmul.f32 %v666, %v578
  %670 = vrot.lane.b32.xlu0 %v667, 64
  %v671 = vpop.permute.xlu0 %670
  %v673 = vmul.f32 %v666, %v671
  %675 = vrot.lane.b32.xlu0 %v673, 32
  %v676 = vpop.permute.xlu0 %675
  %v678 = vadd.f32 %v668, %v676
  %v679 = vtanh.pop %v678
  %681 = vrot.lane.b32.xlu0 %v679, 64
  %v682 = vpop.permute.xlu0 %681
  %v684 = vmul.f32 %v666, %v682
  %686 = vrot.lane.b32.xlu0 %v684, 32
  %v687 = vpop.permute.xlu0 %686
  %v688 = vsel %vm186, %v687, 0
  %690 = vmatprep.subr.mxu0 0.0
  %691 = vmatpush1.msra.mxu0 0.0
  %692 = vmatprep.subr.mxu0 0.0
  %693 = vmatpush1.msra.mxu0 0.0
  %694 = vmatprep.subr.mxu0 0.0
  %695 = vmatpush1.msra.mxu0 0.0
  %696 = vmatprep.subr.mxu0 0.0
  %697 = vmatpush1.msra.mxu0 0.0
  %698 = vmatprep.subr.mxu0 0.0
  %699 = vmatpush1.msra.mxu0 0.0
  %700 = vmatprep.subr.mxu0 0.0
  %701 = vmatpush1.msra.mxu0 0.0
  %702 = vmatprep.subr.mxu0 0.0
  %703 = vmatpush1.msra.mxu0 0.0
  %704 = vmatprep.subr.mxu0 0.0
  %705 = vmatpush1.msra.mxu0 0.0
  %706 = vmatprep.subr.mxu0 0.0
  %707 = vmatpush1.msra.mxu0 0.0
  %708 = vmatprep.subr.mxu0 0.0
  %709 = vmatpush1.msra.mxu0 0.0
  %710 = vmatprep.subr.mxu0 0.0
  %711 = vmatpush1.msra.mxu0 0.0
  %712 = vmatprep.subr.mxu0 0.0
  %713 = vmatpush1.msra.mxu0 0.0
  %714 = vmatprep.subr.mxu0 0.0
  %715 = vmatpush1.msra.mxu0 %v185
  %716 = vmatprep.subr.mxu0 0.0
  %717 = vmatpush1.msra.mxu0 %v184
  %718 = vmatprep.subr.mxu0 0.0
  %719 = vmatpush1.msra.mxu0 %v183
  %720 = vmatprep.subr.mxu0 0.0
  %721 = vmatpush1.msra.mxu0 %v182
  %722 = vmatprep.subr.mxu0 0.0
  %723 = vmatpush2.msra.mxu0 0.0
  %724 = vmatprep.subr.mxu0 0.0
  %725 = vmatpush2.msra.mxu0 0.0
  %726 = vmatprep.subr.mxu0 0.0
  %727 = vmatpush2.msra.mxu0 0.0
  %728 = vmatprep.subr.mxu0 0.0
  %729 = vmatpush2.msra.mxu0 0.0
  %730 = vmatprep.subr.mxu0 0.0
  %731 = vmatpush2.msra.mxu0 0.0
  %732 = vmatprep.subr.mxu0 0.0
  %733 = vmatpush2.msra.mxu0 0.0
  %734 = vmatprep.subr.mxu0 0.0
  %735 = vmatpush2.msra.mxu0 0.0
  %736 = vmatprep.subr.mxu0 0.0
  %737 = vmatpush2.msra.mxu0 0.0
  %738 = vmatprep.subr.mxu0 0.0
  %739 = vmatpush2.msra.mxu0 0.0
  %740 = vmatprep.subr.mxu0 0.0
  %741 = vmatpush2.msra.mxu0 0.0
  %742 = vmatprep.subr.mxu0 0.0
  %743 = vmatpush2.msra.mxu0 0.0
  %744 = vmatprep.subr.mxu0 0.0
  %745 = vmatpush2.msra.mxu0 0.0
  %746 = vmatprep.subr.mxu0 0.0
  %747 = vmatpush2.msra.mxu0 0.0
  %748 = vmatprep.subr.mxu0 0.0
  %749 = vmatpush2.msra.mxu0 0.0
  %750 = vmatprep.subr.mxu0 0.0
  %751 = vmatpush2.msra.mxu0 0.0
  %752 = vmatprep.subr.mxu0 0.0
  %753 = vmatpush2.msra.mxu0 0.0
  %754 = vmatprep.mubr.f32.mxu0 0.0
  %755 = vmatmul.mubr.f32.gmra.mxu0 %v688
  %v756 = vpop.f32.mrf.mxu0
  %v757 = vadd.f32 0.0, %v756
  %v758 = vpop.f32.mrf.mxu0
  %759 = vdwg.mxu0
  %v760 = vadd.f32 %v169, %v757
  %v761 = vxor.u32 %v760, 2147483648
  %v762 = vmul.f32 %v761, 1.442695
  %v763 = vpow.pop %v762
  %v764 = vadd.f32 %v763, 1.0
  %v765 = vrcp.pop %v764
  %v766 = vmul.f32 1.0, %v765
  %v767 = vtanh.pop %v760
  %v768 = vmul.f32 %v766, %v678
  %770 = vrot.lane.b32.xlu0 %v767, 64
  %v771 = vpop.permute.xlu0 %770
  %v773 = vmul.f32 %v766, %v771
  %775 = vrot.lane.b32.xlu0 %v773, 32
  %v776 = vpop.permute.xlu0 %775
  %v778 = vadd.f32 %v768, %v776
  %v779 = vtanh.pop %v778
  %781 = vrot.lane.b32.xlu0 %v779, 64
  %v782 = vpop.permute.xlu0 %781
  %v784 = vmul.f32 %v766, %v782
  %786 = vrot.lane.b32.xlu0 %v784, 32
  %v787 = vpop.permute.xlu0 %786
  %v788 = vsel %vm186, %v787, 0
  %790 = vmatprep.subr.mxu0 0.0
  %791 = vmatpush1.msra.mxu0 0.0
  %792 = vmatprep.subr.mxu0 0.0
  %793 = vmatpush1.msra.mxu0 0.0
  %794 = vmatprep.subr.mxu0 0.0
  %795 = vmatpush1.msra.mxu0 0.0
  %796 = vmatprep.subr.mxu0 0.0
  %797 = vmatpush1.msra.mxu0 0.0
  %798 = vmatprep.subr.mxu0 0.0
  %799 = vmatpush1.msra.mxu0 0.0
  %800 = vmatprep.subr.mxu0 0.0
  %801 = vmatpush1.msra.mxu0 0.0
  %802 = vmatprep.subr.mxu0 0.0
  %803 = vmatpush1.msra.mxu0 0.0
  %804 = vmatprep.subr.mxu0 0.0
  %805 = vmatpush1.msra.mxu0 0.0
  %806 = vmatprep.subr.mxu0 0.0
  %807 = vmatpush1.msra.mxu0 0.0
  %808 = vmatprep.subr.mxu0 0.0
  %809 = vmatpush1.msra.mxu0 0.0
  %810 = vmatprep.subr.mxu0 0.0
  %811 = vmatpush1.msra.mxu0 0.0
  %812 = vmatprep.subr.mxu0 0.0
  %813 = vmatpush1.msra.mxu0 0.0
  %814 = vmatprep.subr.mxu0 0.0
  %815 = vmatpush1.msra.mxu0 %v185
  %816 = vmatprep.subr.mxu0 0.0
  %817 = vmatpush1.msra.mxu0 %v184
  %818 = vmatprep.subr.mxu0 0.0
  %819 = vmatpush1.msra.mxu0 %v183
  %820 = vmatprep.subr.mxu0 0.0
  %821 = vmatpush1.msra.mxu0 %v182
  %822 = vmatprep.subr.mxu0 0.0
  %823 = vmatpush2.msra.mxu0 0.0
  %824 = vmatprep.subr.mxu0 0.0
  %825 = vmatpush2.msra.mxu0 0.0
  %826 = vmatprep.subr.mxu0 0.0
  %827 = vmatpush2.msra.mxu0 0.0
  %828 = vmatprep.subr.mxu0 0.0
  %829 = vmatpush2.msra.mxu0 0.0
  %830 = vmatprep.subr.mxu0 0.0
  %831 = vmatpush2.msra.mxu0 0.0
  %832 = vmatprep.subr.mxu0 0.0
  %833 = vmatpush2.msra.mxu0 0.0
  %834 = vmatprep.subr.mxu0 0.0
  %835 = vmatpush2.msra.mxu0 0.0
  %836 = vmatprep.subr.mxu0 0.0
  %837 = vmatpush2.msra.mxu0 0.0
  %838 = vmatprep.subr.mxu0 0.0
  %839 = vmatpush2.msra.mxu0 0.0
  %840 = vmatprep.subr.mxu0 0.0
  %841 = vmatpush2.msra.mxu0 0.0
  %842 = vmatprep.subr.mxu0 0.0
  %843 = vmatpush2.msra.mxu0 0.0
  %844 = vmatprep.subr.mxu0 0.0
  %845 = vmatpush2.msra.mxu0 0.0
  %846 = vmatprep.subr.mxu0 0.0
  %847 = vmatpush2.msra.mxu0 0.0
  %848 = vmatprep.subr.mxu0 0.0
  %849 = vmatpush2.msra.mxu0 0.0
  %850 = vmatprep.subr.mxu0 0.0
  %851 = vmatpush2.msra.mxu0 0.0
  %852 = vmatprep.subr.mxu0 0.0
  %853 = vmatpush2.msra.mxu0 0.0
  %854 = vmatprep.mubr.f32.mxu0 0.0
  %855 = vmatmul.mubr.f32.gmra.mxu0 %v788
  %v856 = vpop.f32.mrf.mxu0
  %v857 = vadd.f32 0.0, %v856
  %v858 = vpop.f32.mrf.mxu0
  %859 = vdwg.mxu0
  %v860 = vadd.f32 %v174, %v857
  %v861 = vxor.u32 %v860, 2147483648
  %v862 = vmul.f32 %v861, 1.442695
  %v863 = vpow.pop %v862
  %v864 = vadd.f32 %v863, 1.0
  %v865 = vrcp.pop %v864
  %v866 = vmul.f32 1.0, %v865
  %v867 = vtanh.pop %v860
  %v868 = vmul.f32 %v866, %v778
  %870 = vrot.lane.b32.xlu0 %v867, 64
  %v871 = vpop.permute.xlu0 %870
  %v873 = vmul.f32 %v866, %v871
  %875 = vrot.lane.b32.xlu0 %v873, 32
  %v876 = vpop.permute.xlu0 %875
  %v878 = vadd.f32 %v868, %v876
  %v879 = vtanh.pop %v878
  %881 = vrot.lane.b32.xlu0 %v879, 64
  %v882 = vpop.permute.xlu0 %881
  %v884 = vmul.f32 %v866, %v882
  %886 = vrot.lane.b32.xlu0 %v884, 32
  %v887 = vpop.permute.xlu0 %886
  %v888 = vsel %vm186, %v887, 0
  %890 = vmatprep.subr.mxu0 0.0
  %891 = vmatpush1.msra.mxu0 0.0
  %892 = vmatprep.subr.mxu0 0.0
  %893 = vmatpush1.msra.mxu0 0.0
  %894 = vmatprep.subr.mxu0 0.0
  %895 = vmatpush1.msra.mxu0 0.0
  %896 = vmatprep.subr.mxu0 0.0
  %897 = vmatpush1.msra.mxu0 0.0
  %898 = vmatprep.subr.mxu0 0.0
  %899 = vmatpush1.msra.mxu0 0.0
  %900 = vmatprep.subr.mxu0 0.0
  %901 = vmatpush1.msra.mxu0 0.0
  %902 = vmatprep.subr.mxu0 0.0
  %903 = vmatpush1.msra.mxu0 0.0
  %904 = vmatprep.subr.mxu0 0.0
  %905 = vmatpush1.msra.mxu0 0.0
  %906 = vmatprep.subr.mxu0 0.0
  %907 = vmatpush1.msra.mxu0 0.0
  %908 = vmatprep.subr.mxu0 0.0
  %909 = vmatpush1.msra.mxu0 0.0
  %910 = vmatprep.subr.mxu0 0.0
  %911 = vmatpush1.msra.mxu0 0.0
  %912 = vmatprep.subr.mxu0 0.0
  %913 = vmatpush1.msra.mxu0 0.0
  %914 = vmatprep.subr.mxu0 0.0
  %915 = vmatpush1.msra.mxu0 %v185
  %916 = vmatprep.subr.mxu0 0.0
  %917 = vmatpush1.msra.mxu0 %v184
  %918 = vmatprep.subr.mxu0 0.0
  %919 = vmatpush1.msra.mxu0 %v183
  %920 = vmatprep.subr.mxu0 0.0
  %921 = vmatpush1.msra.mxu0 %v182
  %922 = vmatprep.subr.mxu0 0.0
  %923 = vmatpush2.msra.mxu0 0.0
  %924 = vmatprep.subr.mxu0 0.0
  %925 = vmatpush2.msra.mxu0 0.0
  %926 = vmatprep.subr.mxu0 0.0
  %927 = vmatpush2.msra.mxu0 0.0
  %928 = vmatprep.subr.mxu0 0.0
  %929 = vmatpush2.msra.mxu0 0.0
  %930 = vmatprep.subr.mxu0 0.0
  %931 = vmatpush2.msra.mxu0 0.0
  %932 = vmatprep.subr.mxu0 0.0
  %933 = vmatpush2.msra.mxu0 0.0
  %934 = vmatprep.subr.mxu0 0.0
  %935 = vmatpush2.msra.mxu0 0.0
  %936 = vmatprep.subr.mxu0 0.0
  %937 = vmatpush2.msra.mxu0 0.0
  %938 = vmatprep.subr.mxu0 0.0
  %939 = vmatpush2.msra.mxu0 0.0
  %940 = vmatprep.subr.mxu0 0.0
  %941 = vmatpush2.msra.mxu0 0.0
  %942 = vmatprep.subr.mxu0 0.0
  %943 = vmatpush2.msra.mxu0 0.0
  %944 = vmatprep.subr.mxu0 0.0
  %945 = vmatpush2.msra.mxu0 0.0
  %946 = vmatprep.subr.mxu0 0.0
  %947 = vmatpush2.msra.mxu0 0.0
  %948 = vmatprep.subr.mxu0 0.0
  %949 = vmatpush2.msra.mxu0 0.0
  %950 = vmatprep.subr.mxu0 0.0
  %951 = vmatpush2.msra.mxu0 0.0
  %952 = vmatprep.subr.mxu0 0.0
  %953 = vmatpush2.msra.mxu0 0.0
  %954 = vmatprep.mubr.f32.mxu0 0.0
  %955 = vmatmul.mubr.f32.gmra.mxu0 %v888
  %v956 = vpop.f32.mrf.mxu0
  %v957 = vadd.f32 0.0, %v956
  %v958 = vpop.f32.mrf.mxu0
  %959 = vdwg.mxu0
  %v960 = vadd.f32 %v179, %v957
  %v961 = vxor.u32 %v960, 2147483648
  %v962 = vmul.f32 %v961, 1.442695
  %v963 = vpow.pop %v962
  %v964 = vadd.f32 %v963, 1.0
  %v965 = vrcp.pop %v964
  %v966 = vmul.f32 1.0, %v965
  %v967 = vtanh.pop %v960
  %v968 = vmul.f32 %v966, %v878
  %970 = vrot.lane.b32.xlu0 %v967, 64
  %v971 = vpop.permute.xlu0 %970
  %v973 = vmul.f32 %v966, %v971
  %975 = vrot.lane.b32.xlu0 %v973, 32
  %v976 = vpop.permute.xlu0 %975
  %v978 = vadd.f32 %v968, %v976
  %v979 = vtanh.pop %v978
  %981 = vrot.lane.b32.xlu0 %v979, 64
  %v982 = vpop.permute.xlu0 %981
  %v984 = vmul.f32 %v966, %v982
  %v985 = vld [vmem:[%s4] sm:$0xff]
  %v986 = vld [vmem:[%s4 + $0x8] sm:$0xff]
  %v987 = vld [vmem:[%s4 + $0x10] sm:$0xff]
  %v988 = vld [vmem:[%s4 + $0x18] sm:$0xff]
  %v989 = vld [vmem:[%s5] sm:$0x1]
  %v991 = vlaneseq
  %v992 = vshrl.u32 %v991, 7
  %v993 = vsub.s32 0, %v992
  %v994 = vrot.slane %v989, %v993
  %997 = vrot.lane.b32.xlu0 %v984, 32
  %v998 = vpop.permute.xlu0 %997
  %v999 = vsel %vm186, %v998, 0
  %1001 = vmatprep.subr.mxu0 0.0
  %1002 = vmatpush1.msra.mxu0 0.0
  %1003 = vmatprep.subr.mxu0 0.0
  %1004 = vmatpush1.msra.mxu0 0.0
  %1005 = vmatprep.subr.mxu0 0.0
  %1006 = vmatpush1.msra.mxu0 0.0
  %1007 = vmatprep.subr.mxu0 0.0
  %1008 = vmatpush1.msra.mxu0 0.0
  %1009 = vmatprep.subr.mxu0 0.0
  %1010 = vmatpush1.msra.mxu0 0.0
  %1011 = vmatprep.subr.mxu0 0.0
  %1012 = vmatpush1.msra.mxu0 0.0
  %1013 = vmatprep.subr.mxu0 0.0
  %1014 = vmatpush1.msra.mxu0 0.0
  %1015 = vmatprep.subr.mxu0 0.0
  %1016 = vmatpush1.msra.mxu0 0.0
  %1017 = vmatprep.subr.mxu0 0.0
  %1018 = vmatpush1.msra.mxu0 0.0
  %1019 = vmatprep.subr.mxu0 0.0
  %1020 = vmatpush1.msra.mxu0 0.0
  %1021 = vmatprep.subr.mxu0 0.0
  %1022 = vmatpush1.msra.mxu0 0.0
  %1023 = vmatprep.subr.mxu0 0.0
  %1024 = vmatpush1.msra.mxu0 0.0
  %1025 = vmatprep.subr.mxu0 0.0
  %1026 = vmatpush1.msra.mxu0 %v988
  %1027 = vmatprep.subr.mxu0 0.0
  %1028 = vmatpush1.msra.mxu0 %v987
  %1029 = vmatprep.subr.mxu0 0.0
  %1030 = vmatpush1.msra.mxu0 %v986
  %1031 = vmatprep.subr.mxu0 0.0
  %1032 = vmatpush1.msra.mxu0 %v985
  %1033 = vmatprep.subr.mxu0 0.0
  %1034 = vmatpush2.msra.mxu0 0.0
  %1035 = vmatprep.subr.mxu0 0.0
  %1036 = vmatpush2.msra.mxu0 0.0
  %1037 = vmatprep.subr.mxu0 0.0
  %1038 = vmatpush2.msra.mxu0 0.0
  %1039 = vmatprep.subr.mxu0 0.0
  %1040 = vmatpush2.msra.mxu0 0.0
  %1041 = vmatprep.subr.mxu0 0.0
  %1042 = vmatpush2.msra.mxu0 0.0
  %1043 = vmatprep.subr.mxu0 0.0
  %1044 = vmatpush2.msra.mxu0 0.0
  %1045 = vmatprep.subr.mxu0 0.0
  %1046 = vmatpush2.msra.mxu0 0.0
  %1047 = vmatprep.subr.mxu0 0.0
  %1048 = vmatpush2.msra.mxu0 0.0
  %1049 = vmatprep.subr.mxu0 0.0
  %1050 = vmatpush2.msra.mxu0 0.0
  %1051 = vmatprep.subr.mxu0 0.0
  %1052 = vmatpush2.msra.mxu0 0.0
  %1053 = vmatprep.subr.mxu0 0.0
  %1054 = vmatpush2.msra.mxu0 0.0
  %1055 = vmatprep.subr.mxu0 0.0
  %1056 = vmatpush2.msra.mxu0 0.0
  %1057 = vmatprep.subr.mxu0 0.0
  %1058 = vmatpush2.msra.mxu0 0.0
  %1059 = vmatprep.subr.mxu0 0.0
  %1060 = vmatpush2.msra.mxu0 0.0
  %1061 = vmatprep.subr.mxu0 0.0
  %1062 = vmatpush2.msra.mxu0 0.0
  %1063 = vmatprep.subr.mxu0 0.0
  %1064 = vmatpush2.msra.mxu0 0.0
  %1065 = vmatprep.mubr.f32.mxu0 0.0
  %1066 = vmatmul.mubr.f32.gmra.mxu0 %v999
  %v1067 = vpop.f32.mrf.mxu0
  %v1068 = vadd.f32 %v994, %v1067
  %v1069 = vpop.f32.mrf.mxu0
  %1070 = vdwg.mxu0
  %v1071 = vld [vmem:[%s6] sm:$0xff]
  %v1072 = vld [vmem:[%s6 + $0x8] sm:$0xff]
  %v1073 = vld [vmem:[%s6 + $0x10] sm:$0xff]
  %v1074 = vld [vmem:[%s6 + $0x18] sm:$0xff]
  %v1075 = vld [vmem:[%s6 + $0x20] sm:$0xff]
  %v1076 = vld [vmem:[%s6 + $0x28] sm:$0xff]
  %v1077 = vld [vmem:[%s7] sm:$0x1]
  %v1079 = vlaneseq
  %v1080 = vshrl.u32 %v1079, 7
  %v1081 = vsub.s32 0, %v1080
  %v1082 = vrot.slane %v1077, %v1081
  %vm1084 = vcmask 392192
  %v1086 = vsel %vm1084, %v1068, 0
  %1088 = vmatprep.subr.mxu0 0.0
  %1089 = vmatpush1.msra.mxu0 0.0
  %1090 = vmatprep.subr.mxu0 0.0
  %1091 = vmatpush1.msra.mxu0 0.0
  %1092 = vmatprep.subr.mxu0 0.0
  %1093 = vmatpush1.msra.mxu0 0.0
  %1094 = vmatprep.subr.mxu0 0.0
  %1095 = vmatpush1.msra.mxu0 0.0
  %1096 = vmatprep.subr.mxu0 0.0
  %1097 = vmatpush1.msra.mxu0 0.0
  %1098 = vmatprep.subr.mxu0 0.0
  %1099 = vmatpush1.msra.mxu0 0.0
  %1100 = vmatprep.subr.mxu0 0.0
  %1101 = vmatpush1.msra.mxu0 0.0
  %1102 = vmatprep.subr.mxu0 0.0
  %1103 = vmatpush1.msra.mxu0 0.0
  %1104 = vmatprep.subr.mxu0 0.0
  %1105 = vmatpush1.msra.mxu0 0.0
  %1106 = vmatprep.subr.mxu0 0.0
  %1107 = vmatpush1.msra.mxu0 0.0
  %1108 = vmatprep.subr.mxu0 0.0
  %1109 = vmatpush1.msra.mxu0 %v1076
  %1110 = vmatprep.subr.mxu0 0.0
  %1111 = vmatpush1.msra.mxu0 %v1075
  %1112 = vmatprep.subr.mxu0 0.0
  %1113 = vmatpush1.msra.mxu0 %v1074
  %1114 = vmatprep.subr.mxu0 0.0
  %1115 = vmatpush1.msra.mxu0 %v1073
  %1116 = vmatprep.subr.mxu0 0.0
  %1117 = vmatpush1.msra.mxu0 %v1072
  %1118 = vmatprep.subr.mxu0 0.0
  %1119 = vmatpush1.msra.mxu0 %v1071
  %1120 = vmatprep.subr.mxu0 0.0
  %1121 = vmatpush2.msra.mxu0 0.0
  %1122 = vmatprep.subr.mxu0 0.0
  %1123 = vmatpush2.msra.mxu0 0.0
  %1124 = vmatprep.subr.mxu0 0.0
  %1125 = vmatpush2.msra.mxu0 0.0
  %1126 = vmatprep.subr.mxu0 0.0
  %1127 = vmatpush2.msra.mxu0 0.0
  %1128 = vmatprep.subr.mxu0 0.0
  %1129 = vmatpush2.msra.mxu0 0.0
  %1130 = vmatprep.subr.mxu0 0.0
  %1131 = vmatpush2.msra.mxu0 0.0
  %1132 = vmatprep.subr.mxu0 0.0
  %1133 = vmatpush2.msra.mxu0 0.0
  %1134 = vmatprep.subr.mxu0 0.0
  %1135 = vmatpush2.msra.mxu0 0.0
  %1136 = vmatprep.subr.mxu0 0.0
  %1137 = vmatpush2.msra.mxu0 0.0
  %1138 = vmatprep.subr.mxu0 0.0
  %1139 = vmatpush2.msra.mxu0 0.0
  %1140 = vmatprep.subr.mxu0 0.0
  %1141 = vmatpush2.msra.mxu0 0.0
  %1142 = vmatprep.subr.mxu0 0.0
  %1143 = vmatpush2.msra.mxu0 0.0
  %1144 = vmatprep.subr.mxu0 0.0
  %1145 = vmatpush2.msra.mxu0 0.0
  %1146 = vmatprep.subr.mxu0 0.0
  %1147 = vmatpush2.msra.mxu0 0.0
  %1148 = vmatprep.subr.mxu0 0.0
  %1149 = vmatpush2.msra.mxu0 0.0
  %1150 = vmatprep.subr.mxu0 0.0
  %1151 = vmatpush2.msra.mxu0 0.0
  %1152 = vmatprep.mubr.f32.mxu0 0.0
  %1153 = vmatmul.mubr.f32.gmra.mxu0 %v1086
  %v1154 = vpop.f32.mrf.mxu0
  %v1155 = vadd.f32 %v1082, %v1154
  %v1156 = vpop.f32.mrf.mxu0
  %1157 = vdwg.mxu0
  %v1158 = vld [vmem:[%s8] sm:$0xff]
  %v1159 = vld [vmem:[%s8 + $0x8] sm:$0xff]
  %v1160 = vld [vmem:[%s8 + $0x10] sm:$0xff]
  %v1161 = vld [vmem:[%s9] sm:$0x1]
  %v1163 = vlaneseq
  %v1164 = vshrl.u32 %v1163, 7
  %v1165 = vsub.s32 0, %v1164
  %v1166 = vrot.slane %v1161, %v1165
  %vm1168 = vcmask 195584
  %v1170 = vsel %vm1168, %v1155, 0
  %1172 = vmatprep.subr.mxu0 0.0
  %1173 = vmatpush1.msra.mxu0 0.0
  %1174 = vmatprep.subr.mxu0 0.0
  %1175 = vmatpush1.msra.mxu0 0.0
  %1176 = vmatprep.subr.mxu0 0.0
  %1177 = vmatpush1.msra.mxu0 0.0
  %1178 = vmatprep.subr.mxu0 0.0
  %1179 = vmatpush1.msra.mxu0 0.0
  %1180 = vmatprep.subr.mxu0 0.0
  %1181 = vmatpush1.msra.mxu0 0.0
  %1182 = vmatprep.subr.mxu0 0.0
  %1183 = vmatpush1.msra.mxu0 0.0
  %1184 = vmatprep.subr.mxu0 0.0
  %1185 = vmatpush1.msra.mxu0 0.0
  %1186 = vmatprep.subr.mxu0 0.0
  %1187 = vmatpush1.msra.mxu0 0.0
  %1188 = vmatprep.subr.mxu0 0.0
  %1189 = vmatpush1.msra.mxu0 0.0
  %1190 = vmatprep.subr.mxu0 0.0
  %1191 = vmatpush1.msra.mxu0 0.0
  %1192 = vmatprep.subr.mxu0 0.0
  %1193 = vmatpush1.msra.mxu0 0.0
  %1194 = vmatprep.subr.mxu0 0.0
  %1195 = vmatpush1.msra.mxu0 0.0
  %1196 = vmatprep.subr.mxu0 0.0
  %1197 = vmatpush1.msra.mxu0 0.0
  %1198 = vmatprep.subr.mxu0 0.0
  %1199 = vmatpush1.msra.mxu0 %v1160
  %1200 = vmatprep.subr.mxu0 0.0
  %1201 = vmatpush1.msra.mxu0 %v1159
  %1202 = vmatprep.subr.mxu0 0.0
  %1203 = vmatpush1.msra.mxu0 %v1158
  %1204 = vmatprep.subr.mxu0 0.0
  %1205 = vmatpush2.msra.mxu0 0.0
  %1206 = vmatprep.subr.mxu0 0.0
  %1207 = vmatpush2.msra.mxu0 0.0
  %1208 = vmatprep.subr.mxu0 0.0
  %1209 = vmatpush2.msra.mxu0 0.0
  %1210 = vmatprep.subr.mxu0 0.0
  %1211 = vmatpush2.msra.mxu0 0.0
  %1212 = vmatprep.subr.mxu0 0.0
  %1213 = vmatpush2.msra.mxu0 0.0
  %1214 = vmatprep.subr.mxu0 0.0
  %1215 = vmatpush2.msra.mxu0 0.0
  %1216 = vmatprep.subr.mxu0 0.0
  %1217 = vmatpush2.msra.mxu0 0.0
  %1218 = vmatprep.subr.mxu0 0.0
  %1219 = vmatpush2.msra.mxu0 0.0
  %1220 = vmatprep.subr.mxu0 0.0
  %1221 = vmatpush2.msra.mxu0 0.0
  %1222 = vmatprep.subr.mxu0 0.0
  %1223 = vmatpush2.msra.mxu0 0.0
  %1224 = vmatprep.subr.mxu0 0.0
  %1225 = vmatpush2.msra.mxu0 0.0
  %1226 = vmatprep.subr.mxu0 0.0
  %1227 = vmatpush2.msra.mxu0 0.0
  %1228 = vmatprep.subr.mxu0 0.0
  %1229 = vmatpush2.msra.mxu0 0.0
  %1230 = vmatprep.subr.mxu0 0.0
  %1231 = vmatpush2.msra.mxu0 0.0
  %1232 = vmatprep.subr.mxu0 0.0
  %1233 = vmatpush2.msra.mxu0 0.0
  %1234 = vmatprep.subr.mxu0 0.0
  %1235 = vmatpush2.msra.mxu0 0.0
  %1236 = vmatprep.mubr.f32.mxu0 0.0
  %1237 = vmatmul.mubr.f32.gmra.mxu0 %v1170
  %v1238 = vpop.f32.mrf.mxu0
  %v1239 = vadd.f32 %v1166, %v1238
  %v1240 = vpop.f32.mrf.mxu0
  %1241 = vdwg.mxu0
  %1243 = vrot.lane.b32.xlu0 %v1239, 127
  %v1244 = vpop.permute.xlu0 %1243
  %v1246 = vsub.f32 %v1239, %v1244
  %v1247 = vxor.u32 %v1246, 2147483648
  %v1248 = vmul.f32 %v1247, 1.442695
  %v1249 = vpow.pop %v1248
  %v1250 = vadd.f32 %v1249, 1.0
  %v1251 = vrcp.pop %v1250
  %v1252 = vmul.f32 1.0, %v1251
  %v1253 = vsub.f32 1.0, %v1252
  %1255 = vrot.lane.b32.xlu0 %v1253, 1
  %v1256 = vpop.permute.xlu0 %1255
  %vm1258 = vcmask 7168
  %v1259 = vsel %vm1258, %v1252, %v1256
  %vm1260 = vcmask 15360
  %1261 = vst.msk [vmem:[%s10] sm:$0xff] %vm1260, %v1259
  // Predicated region
  $region42: #{tpu_custom_call.1} parent=0 // pred_check
    _
  $region43: #{tpu_custom_call.1} parent=0 // pred_check_branch
    %1263 = sbr.rel (0) target = $region45
  $region44: #{tpu_custom_call.1} parent=0 // pred_region
    _
  $region45: #{tpu_custom_call.1} parent=0 // pred_fallthru
    _
  // Predicated region
  $region46: #{tpu_custom_call.1} parent=0 // pred_check
    _
  $region47: #{tpu_custom_call.1} parent=0 // pred_check_branch
    %1265 = sbr.rel (0) target = $region49
  $region48: #{tpu_custom_call.1} parent=0 // pred_region
    _
  $region49: #{tpu_custom_call.1} parent=0 // pred_fallthru
    _

</llo_original>
